<compile_context>
chip_gen: v6e
topology: v6e:2x2x1
jax: 0.10.0
libtpu: 0.0.40
codegen_flags: <defaults>
</compile_context>

<pallas_src>
import functools

import jax
import jax.numpy as jnp
from jax.experimental import pallas as pl
from jax.experimental.pallas import tpu as pltpu


# ------------------------- configuration (small) -------------------------
class Config:
    word_features_types = 18
    pos_features_types = 18
    dep_features_types = 12
    embedding_dim = 16
    num_classes = 3
    keep_prob = 0.5  # dropout prob in the torch module; unused at inference


D_IN = (Config.word_features_types + Config.pos_features_types +
        Config.dep_features_types) * Config.embedding_dim            # 768 (6*128)
L1_HIDDEN, L2_HIDDEN = 300, 50
L1_PAD, L2_PAD, C_PAD = 384, 128, 128                                # lane-dense
EPS = 1e-5


def _round_up(x, m):
    return (x + m - 1) // m * m


# ------------------------------ Pallas kernel ------------------------------
def _masked_layernorm(h, n_true):
    """LayerNorm (gamma=1, beta=0, eps=1e-5) over the first `n_true` lanes of h.
    Padded lanes (>= n_true) of h are exactly zero on entry (zero-padded W/b)."""
    lane = jax.lax.broadcasted_iota(jnp.int32, h.shape, dimension=1)
    mask = (lane < n_true).astype(h.dtype)
    inv_n = 1.0 / n_true
    mu = jnp.sum(h * mask, axis=-1, keepdims=True) * inv_n
    d = (h - mu) * mask
    var = jnp.sum(d * d, axis=-1, keepdims=True) * inv_n
    return (h - mu) * jax.lax.rsqrt(var + EPS)


def parser_mlp_kernel(x_ref, w1_ref, b1_ref, w2_ref, b2_ref, w3_ref, b3_ref,
                      o_ref):
    x = x_ref[...]                                            # [bt, 768] bf16

    # hidden1 -> LayerNorm(300) -> ReLU   (bf16 MXU, f32 accumulate, f32 math)
    h1 = jnp.dot(x, w1_ref[...], preferred_element_type=jnp.float32)
    h1 = h1 + b1_ref[...]
    h1 = jnp.maximum(_masked_layernorm(h1, L1_HIDDEN), 0.0)

    # (dropout = identity at inference)

    # hidden2 -> LayerNorm(50) -> ReLU
    h2 = jnp.dot(h1.astype(jnp.bfloat16), w2_ref[...],
                 preferred_element_type=jnp.float32)
    h2 = h2 + b2_ref[...]
    h2 = jnp.maximum(_masked_layernorm(h2, L2_HIDDEN), 0.0)

    # output layer -> ReLU (folded into the padded 128-lane MXU tile; padded
    # output columns are exactly zero, sliced off in the wrapper)
    out = jnp.dot(h2.astype(jnp.bfloat16), w3_ref[...],
                  preferred_element_type=jnp.float32)
    out = out + b3_ref[...]
    o_ref[...] = jnp.maximum(out, 0.0)


def parser_mlp(x, w1, b1, w2, b2, w3, b3, *, num_classes, b_tile=256):
    """x: [B, 768] bf16; w*: zero-padded bf16 [in_pad, out_pad]; b*: f32 [1, out_pad]."""
    B = x.shape[0]
    b_tile = min(b_tile, _round_up(B, 8))
    B_pad = _round_up(B, b_tile)
    if B_pad != B:
        x = jnp.pad(x, ((0, B_pad - B), (0, 0)))
    grid = (B_pad // b_tile,)

    def resident(arr):
        # full-array block, constant block index -> DMA'd once, stays in VMEM
        return pl.BlockSpec(arr.shape, lambda i: (0, 0))

    out_pad = pl.pallas_call(
        parser_mlp_kernel,
        out_shape=jax.ShapeDtypeStruct((B_pad, C_PAD), jnp.float32),
        grid=grid,
        in_specs=[
            pl.BlockSpec((b_tile, D_IN), lambda i: (i, 0)),        # x: streamed
            resident(w1), resident(b1),
            resident(w2), resident(b2),
            resident(w3), resident(b3),
        ],
        out_specs=pl.BlockSpec((b_tile, C_PAD), lambda i: (i, 0)),
        compiler_params=pltpu.CompilerParams(
            dimension_semantics=("parallel",)),
    )(x, w1, b1, w2, b2, w3, b3)
    return out_pad[:B, :num_classes]


# ------------------------------ model wrapper ------------------------------
def init_params(key, cfg):
    """Logical (unpadded, f32) params mirroring the module's __init__/init_weights."""
    ks = jax.random.split(key, 9)
    initrange = 0.1

    # embedding tables (stand-ins for the pretrained embeddings passed in)
    word_emb = jax.random.normal(ks[0], (100, cfg.embedding_dim), jnp.float32) * 0.1
    pos_emb = jax.random.normal(ks[1], (20, cfg.embedding_dim), jnp.float32) * 0.1
    dep_emb = jax.random.normal(ks[2], (15, cfg.embedding_dim), jnp.float32) * 0.1

    def uni(k, shape, r):
        return jax.random.uniform(k, shape, jnp.float32, minval=-r, maxval=r)

    # weights stored [in, out] (= PyTorch weight.T); init_weights uniform(-0.1,0.1);
    # biases keep Linear's default uniform(-1/sqrt(in), 1/sqrt(in)).
    w1 = uni(ks[3], (D_IN, L1_HIDDEN), initrange)
    b1 = uni(ks[4], (1, L1_HIDDEN), 1.0 / float(D_IN) ** 0.5)
    w2 = uni(ks[5], (L1_HIDDEN, L2_HIDDEN), initrange)
    b2 = uni(ks[6], (1, L2_HIDDEN), 1.0 / float(L1_HIDDEN) ** 0.5)
    w3 = uni(ks[7], (L2_HIDDEN, cfg.num_classes), initrange)
    b3 = uni(ks[8], (1, cfg.num_classes), 1.0 / float(L2_HIDDEN) ** 0.5)

    return dict(word_emb=word_emb, pos_emb=pos_emb, dep_emb=dep_emb,
                w1=w1, b1=b1, w2=w2, b2=b2, w3=w3, b3=b3)


def pack_params(params):
    """Pad Linear params to lane-dense shapes; weights -> bf16, biases stay f32."""
    def pad(a, rows, cols, dtype):
        z = jnp.zeros((rows, cols), dtype)
        return z.at[:a.shape[0], :a.shape[1]].set(a.astype(dtype))

    return dict(
        word_emb=params["word_emb"],
        pos_emb=params["pos_emb"],
        dep_emb=params["dep_emb"],
        w1=pad(params["w1"], D_IN, L1_PAD, jnp.bfloat16),
        b1=pad(params["b1"], 1, L1_PAD, jnp.float32),
        w2=pad(params["w2"], L1_PAD, L2_PAD, jnp.bfloat16),
        b2=pad(params["b2"], 1, L2_PAD, jnp.float32),
        w3=pad(params["w3"], L2_PAD, C_PAD, jnp.bfloat16),
        b3=pad(params["b3"], 1, C_PAD, jnp.float32),
    )


@functools.partial(jax.jit, static_argnames=("b_tile",))
def forward(packed, word_indices, pos_indices, dep_indices, b_tile=256):
    cfg = Config
    B = word_indices.shape[0]
    # embedding lookups + flatten + concat (plain-JAX glue)
    # TODO(synk): fuse this gather into the kernel (PrefetchScalarGridSpec +
    #             VMEM-resident embedding tables) to avoid the HBM round-trip of x.
    w_e = jnp.take(packed["word_emb"], word_indices, axis=0).reshape(B, -1)
    p_e = jnp.take(packed["pos_emb"], pos_indices, axis=0).reshape(B, -1)
    d_e = jnp.take(packed["dep_emb"], dep_indices, axis=0).reshape(B, -1)
    x = jnp.concatenate([w_e, p_e, d_e], axis=1).astype(jnp.bfloat16)  # [B, 768]
    return parser_mlp(x, packed["w1"], packed["b1"],
                      packed["w2"], packed["b2"],
                      packed["w3"], packed["b3"],
                      num_classes=cfg.num_classes, b_tile=b_tile)


def reference_forward(params, word_indices, pos_indices, dep_indices):
    """Pure-JAX reference matching the kernel's bf16-weight / f32-accumulate math."""
    B = word_indices.shape[0]
    w_e = jnp.take(params["word_emb"], word_indices, axis=0).reshape(B, -1)
    p_e = jnp.take(params["pos_emb"], pos_indices, axis=0).reshape(B, -1)
    d_e = jnp.take(params["dep_emb"], dep_indices, axis=0).reshape(B, -1)
    x = jnp.concatenate([w_e, p_e, d_e], axis=1).astype(jnp.bfloat16)

    def ln(h):
        mu = jnp.mean(h, axis=-1, keepdims=True)
        var = jnp.mean((h - mu) ** 2, axis=-1, keepdims=True)
        return (h - mu) / jnp.sqrt(var + EPS)

    bf = jnp.bfloat16
    h1 = jnp.dot(x, params["w1"].astype(bf),
                 preferred_element_type=jnp.float32) + params["b1"]
    h1 = jnp.maximum(ln(h1), 0.0)
    h2 = jnp.dot(h1.astype(bf), params["w2"].astype(bf),
                 preferred_element_type=jnp.float32) + params["b2"]
    h2 = jnp.maximum(ln(h2), 0.0)
    out = jnp.dot(h2.astype(bf), params["w3"].astype(bf),
                  preferred_element_type=jnp.float32) + params["b3"]
    return jnp.maximum(out, 0.0)


# ----------------------------------- main -----------------------------------
if __name__ == "__main__":
    cfg = Config
    key = jax.random.PRNGKey(0)
    k_params, k_w, k_p, k_d = jax.random.split(key, 4)

    params = init_params(k_params, cfg)
    packed = pack_params(params)

    # small check (single grid step)
    B = 8
    word_indices = jax.random.randint(k_w, (B, cfg.word_features_types), 0, 100)
    pos_indices = jax.random.randint(k_p, (B, cfg.pos_features_types), 0, 20)
    dep_indices = jax.random.randint(k_d, (B, cfg.dep_features_types), 0, 15)

    out = jax.block_until_ready(
        forward(packed, word_indices, pos_indices, dep_indices))
    ref = reference_forward(params, word_indices, pos_indices, dep_indices)
    assert out.shape == (B, cfg.num_classes)
    assert jnp.allclose(out, ref, atol=1e-2, rtol=1e-2), "mismatch vs reference"

    # exercise the multi-step batch grid (weights stay resident across steps)
    B2 = 24
    wi2 = jax.random.randint(k_w, (B2, cfg.word_features_types), 0, 100)
    pi2 = jax.random.randint(k_p, (B2, cfg.pos_features_types), 0, 20)
    di2 = jax.random.randint(k_d, (B2, cfg.dep_features_types), 0, 15)
    out2 = jax.block_until_ready(forward(packed, wi2, pi2, di2, b_tile=8))
    ref2 = reference_forward(params, wi2, pi2, di2)
    assert out2.shape == (B2, cfg.num_classes)
    assert jnp.allclose(out2, ref2, atol=1e-2, rtol=1e-2), "mismatch (tiled grid)"

    print("KERNEL_OK")
</pallas_src>

<mosaic_0001>
module attributes {stable_mosaic.version = 11 : i64} {
  func.func @parser_mlp_kernel(%arg0: i32, %arg1: memref<8x768xbf16, #tpu.memory_space<vmem>>, %arg2: memref<768x384xbf16, #tpu.memory_space<vmem>>, %arg3: memref<1x384xf32, #tpu.memory_space<vmem>>, %arg4: memref<384x128xbf16, #tpu.memory_space<vmem>>, %arg5: memref<1x128xf32, #tpu.memory_space<vmem>>, %arg6: memref<128x128xbf16, #tpu.memory_space<vmem>>, %arg7: memref<1x128xf32, #tpu.memory_space<vmem>>, %arg8: memref<8x128xf32, #tpu.memory_space<vmem>>) attributes {dimension_semantics = [#tpu.dimension_semantics<parallel>], iteration_bounds = array<i64: 1>, scalar_prefetch = 0 : i64, scratch_operands = 0 : i64, tpu.core_type = #tpu.core_type<tc>, window_params = [{transform_indices = @transform_0, window_bounds = array<i64: 8, 768>}, {pipeline_mode = #tpu.pipeline_mode<synchronous>, transform_indices = @transform_1, window_bounds = array<i64: 768, 384>}, {pipeline_mode = #tpu.pipeline_mode<synchronous>, transform_indices = @transform_2, window_bounds = array<i64: 1, 384>}, {pipeline_mode = #tpu.pipeline_mode<synchronous>, transform_indices = @transform_3, window_bounds = array<i64: 384, 128>}, {pipeline_mode = #tpu.pipeline_mode<synchronous>, transform_indices = @transform_4, window_bounds = array<i64: 1, 128>}, {pipeline_mode = #tpu.pipeline_mode<synchronous>, transform_indices = @transform_5, window_bounds = array<i64: 128, 128>}, {pipeline_mode = #tpu.pipeline_mode<synchronous>, transform_indices = @transform_6, window_bounds = array<i64: 1, 128>}, {transform_indices = @transform_7, window_bounds = array<i64: 8, 128>}]} {
    %c0 = arith.constant 0 : index
    %c0_0 = arith.constant 0 : index
    %0 = vector.load %arg1[%c0, %c0_0] : memref<8x768xbf16, #tpu.memory_space<vmem>>, vector<8x768xbf16>
    %c0_1 = arith.constant 0 : index
    %c0_2 = arith.constant 0 : index
    %1 = vector.load %arg2[%c0_1, %c0_2] : memref<768x384xbf16, #tpu.memory_space<vmem>>, vector<768x384xbf16>
    %cst = arith.constant dense<0.000000e+00> : vector<8x384xf32>
    %2 = tpu.matmul %0, %1, %cst {dimension_numbers = #tpu.dot_dimension_numbers<[1], [0], [0], [1], [0, 0, 1, 1], [], []>} : vector<8x768xbf16>, vector<768x384xbf16>, vector<8x384xf32> -> vector<8x384xf32>
    %c0_3 = arith.constant 0 : index
    %c0_4 = arith.constant 0 : index
    %3 = vector.load %arg3[%c0_3, %c0_4] : memref<1x384xf32, #tpu.memory_space<vmem>>, vector<1x384xf32>
    %4 = vector.broadcast %3 : vector<1x384xf32> to vector<8x384xf32>
    %5 = arith.addf %2, %4 : vector<8x384xf32>
    %6 = tpu.iota {dimensions = array<i32: 1>} : vector<8x384xi32>
    %c300_i32 = arith.constant 300 : i32
    %7 = vector.broadcast %c300_i32 : i32 to vector<8x384xi32>
    %8 = arith.cmpi slt, %6, %7 : vector<8x384xi32>
    %9 = arith.extui %8 : vector<8x384xi1> to vector<8x384xi32>
    %10 = arith.sitofp %9 : vector<8x384xi32> to vector<8x384xf32>
    %11 = arith.mulf %5, %10 : vector<8x384xf32>
    %cst_5 = arith.constant dense<0.000000e+00> : vector<8xf32>
    %12 = vector.multi_reduction <add>, %11, %cst_5 [1] : vector<8x384xf32> to vector<8xf32>
    %13 = vector.shape_cast %12 : vector<8xf32> to vector<8x1xf32>
    %cst_6 = arith.constant 0.00333333341 : f32
    %14 = vector.broadcast %cst_6 : f32 to vector<8x1xf32>
    %15 = arith.mulf %13, %14 : vector<8x1xf32>
    %16 = vector.broadcast %15 : vector<8x1xf32> to vector<8x384xf32>
    %17 = arith.subf %5, %16 : vector<8x384xf32>
    %18 = arith.mulf %17, %10 : vector<8x384xf32>
    %19 = arith.mulf %18, %18 : vector<8x384xf32>
    %cst_7 = arith.constant dense<0.000000e+00> : vector<8xf32>
    %20 = vector.multi_reduction <add>, %19, %cst_7 [1] : vector<8x384xf32> to vector<8xf32>
    %21 = vector.shape_cast %20 : vector<8xf32> to vector<8x1xf32>
    %cst_8 = arith.constant 0.00333333341 : f32
    %22 = vector.broadcast %cst_8 : f32 to vector<8x1xf32>
    %23 = arith.mulf %21, %22 : vector<8x1xf32>
    %24 = vector.broadcast %15 : vector<8x1xf32> to vector<8x384xf32>
    %25 = arith.subf %5, %24 : vector<8x384xf32>
    %cst_9 = arith.constant 9.99999974E-6 : f32
    %26 = vector.broadcast %cst_9 : f32 to vector<8x1xf32>
    %27 = arith.addf %23, %26 : vector<8x1xf32>
    %28 = math.rsqrt %27 : vector<8x1xf32>
    %29 = vector.broadcast %28 : vector<8x1xf32> to vector<8x384xf32>
    %30 = arith.mulf %25, %29 : vector<8x384xf32>
    %cst_10 = arith.constant 0.000000e+00 : f32
    %31 = vector.broadcast %cst_10 : f32 to vector<8x384xf32>
    %32 = arith.maximumf %30, %31 : vector<8x384xf32>
    %33 = arith.truncf %32 : vector<8x384xf32> to vector<8x384xbf16>
    %c0_11 = arith.constant 0 : index
    %c0_12 = arith.constant 0 : index
    %34 = vector.load %arg4[%c0_11, %c0_12] : memref<384x128xbf16, #tpu.memory_space<vmem>>, vector<384x128xbf16>
    %cst_13 = arith.constant dense<0.000000e+00> : vector<8x128xf32>
    %35 = tpu.matmul %33, %34, %cst_13 {dimension_numbers = #tpu.dot_dimension_numbers<[1], [0], [0], [1], [0, 0, 1, 1], [], []>} : vector<8x384xbf16>, vector<384x128xbf16>, vector<8x128xf32> -> vector<8x128xf32>
    %c0_14 = arith.constant 0 : index
    %c0_15 = arith.constant 0 : index
    %36 = vector.load %arg5[%c0_14, %c0_15] : memref<1x128xf32, #tpu.memory_space<vmem>>, vector<1x128xf32>
    %37 = vector.broadcast %36 : vector<1x128xf32> to vector<8x128xf32>
    %38 = arith.addf %35, %37 : vector<8x128xf32>
    %39 = tpu.iota {dimensions = array<i32: 1>} : vector<8x128xi32>
    %c50_i32 = arith.constant 50 : i32
    %40 = vector.broadcast %c50_i32 : i32 to vector<8x128xi32>
    %41 = arith.cmpi slt, %39, %40 : vector<8x128xi32>
    %42 = arith.extui %41 : vector<8x128xi1> to vector<8x128xi32>
    %43 = arith.sitofp %42 : vector<8x128xi32> to vector<8x128xf32>
    %44 = arith.mulf %38, %43 : vector<8x128xf32>
    %cst_16 = arith.constant dense<0.000000e+00> : vector<8xf32>
    %45 = vector.multi_reduction <add>, %44, %cst_16 [1] : vector<8x128xf32> to vector<8xf32>
    %46 = vector.shape_cast %45 : vector<8xf32> to vector<8x1xf32>
    %cst_17 = arith.constant 2.000000e-02 : f32
    %47 = vector.broadcast %cst_17 : f32 to vector<8x1xf32>
    %48 = arith.mulf %46, %47 : vector<8x1xf32>
    %49 = vector.broadcast %48 : vector<8x1xf32> to vector<8x128xf32>
    %50 = arith.subf %38, %49 : vector<8x128xf32>
    %51 = arith.mulf %50, %43 : vector<8x128xf32>
    %52 = arith.mulf %51, %51 : vector<8x128xf32>
    %cst_18 = arith.constant dense<0.000000e+00> : vector<8xf32>
    %53 = vector.multi_reduction <add>, %52, %cst_18 [1] : vector<8x128xf32> to vector<8xf32>
    %54 = vector.shape_cast %53 : vector<8xf32> to vector<8x1xf32>
    %cst_19 = arith.constant 2.000000e-02 : f32
    %55 = vector.broadcast %cst_19 : f32 to vector<8x1xf32>
    %56 = arith.mulf %54, %55 : vector<8x1xf32>
    %57 = vector.broadcast %48 : vector<8x1xf32> to vector<8x128xf32>
    %58 = arith.subf %38, %57 : vector<8x128xf32>
    %cst_20 = arith.constant 9.99999974E-6 : f32
    %59 = vector.broadcast %cst_20 : f32 to vector<8x1xf32>
    %60 = arith.addf %56, %59 : vector<8x1xf32>
    %61 = math.rsqrt %60 : vector<8x1xf32>
    %62 = vector.broadcast %61 : vector<8x1xf32> to vector<8x128xf32>
    %63 = arith.mulf %58, %62 : vector<8x128xf32>
    %cst_21 = arith.constant 0.000000e+00 : f32
    %64 = vector.broadcast %cst_21 : f32 to vector<8x128xf32>
    %65 = arith.maximumf %63, %64 : vector<8x128xf32>
    %66 = arith.truncf %65 : vector<8x128xf32> to vector<8x128xbf16>
    %c0_22 = arith.constant 0 : index
    %c0_23 = arith.constant 0 : index
    %67 = vector.load %arg6[%c0_22, %c0_23] : memref<128x128xbf16, #tpu.memory_space<vmem>>, vector<128x128xbf16>
    %cst_24 = arith.constant dense<0.000000e+00> : vector<8x128xf32>
    %68 = tpu.matmul %66, %67, %cst_24 {dimension_numbers = #tpu.dot_dimension_numbers<[1], [0], [0], [1], [0, 0, 1, 1], [], []>} : vector<8x128xbf16>, vector<128x128xbf16>, vector<8x128xf32> -> vector<8x128xf32>
    %c0_25 = arith.constant 0 : index
    %c0_26 = arith.constant 0 : index
    %69 = vector.load %arg7[%c0_25, %c0_26] : memref<1x128xf32, #tpu.memory_space<vmem>>, vector<1x128xf32>
    %70 = vector.broadcast %69 : vector<1x128xf32> to vector<8x128xf32>
    %71 = arith.addf %68, %70 : vector<8x128xf32>
    %cst_27 = arith.constant 0.000000e+00 : f32
    %72 = vector.broadcast %cst_27 : f32 to vector<8x128xf32>
    %73 = arith.maximumf %71, %72 : vector<8x128xf32>
    %c0_28 = arith.constant 0 : index
    %c0_29 = arith.constant 0 : index
    %74 = vector.load %arg8[%c0_28, %c0_29] : memref<8x128xf32, #tpu.memory_space<vmem>>, vector<8x128xf32>
    tpu.vector_store %arg8[%c0_28, %c0_29], %73 {strides = array<i32>} : memref<8x128xf32, #tpu.memory_space<vmem>>, vector<8x128xf32>,
    return
  }
  func.func @transform_0(%arg0: i32) -> (i32, i32) {
    %c0_i32 = arith.constant 0 : i32
    %c0_i32_0 = arith.constant 0 : i32
    return %arg0, %c0_i32 : i32, i32
  }
  func.func @transform_1(%arg0: i32) -> (i32, i32) {
    %c0_i32 = arith.constant 0 : i32
    %c0_i32_0 = arith.constant 0 : i32
    %c0_i32_1 = arith.constant 0 : i32
    return %c0_i32, %c0_i32_0 : i32, i32
  }
  func.func @transform_2(%arg0: i32) -> (i32, i32) {
    %c0_i32 = arith.constant 0 : i32
    %c0_i32_0 = arith.constant 0 : i32
    %c0_i32_1 = arith.constant 0 : i32
    return %c0_i32, %c0_i32_0 : i32, i32
  }
  func.func @transform_3(%arg0: i32) -> (i32, i32) {
    %c0_i32 = arith.constant 0 : i32
    %c0_i32_0 = arith.constant 0 : i32
    %c0_i32_1 = arith.constant 0 : i32
    return %c0_i32, %c0_i32_0 : i32, i32
  }
  func.func @transform_4(%arg0: i32) -> (i32, i32) {
    %c0_i32 = arith.constant 0 : i32
    %c0_i32_0 = arith.constant 0 : i32
    %c0_i32_1 = arith.constant 0 : i32
    return %c0_i32, %c0_i32_0 : i32, i32
  }
  func.func @transform_5(%arg0: i32) -> (i32, i32) {
    %c0_i32 = arith.constant 0 : i32
    %c0_i32_0 = arith.constant 0 : i32
    %c0_i32_1 = arith.constant 0 : i32
    return %c0_i32, %c0_i32_0 : i32, i32
  }
  func.func @transform_6(%arg0: i32) -> (i32, i32) {
    %c0_i32 = arith.constant 0 : i32
    %c0_i32_0 = arith.constant 0 : i32
    %c0_i32_1 = arith.constant 0 : i32
    return %c0_i32, %c0_i32_0 : i32, i32
  }
  func.func @transform_7(%arg0: i32) -> (i32, i32) {
    %c0_i32 = arith.constant 0 : i32
    %c0_i32_0 = arith.constant 0 : i32
    return %arg0, %c0_i32 : i32, i32
  }
}

</mosaic_0001>

<llo_original>
// kernel: forward.1
$region0: #{forward.1}
  #allocation0 [shape = 'u32[]', space=smem, size = 0x4, offset = 0x4, fixed_abs, tag = 'smem constant byte address 0x4 - core index']
  #allocation1 [shape = 'u32[144,128]{1,0:T(1,128)}', space=vmem, size = 0x12000, scoped, tag = 'internal scratch']
  %s0 = inlined_call_operand.vmem [shape: bf16[8,768], index: 0, kind: input, shape index: {}]
  %s1 = inlined_call_operand.vmem [shape: bf16[768,384], index: 1, kind: input, shape index: {}]
  %s2 = inlined_call_operand.vmem [shape: f32[1,384], index: 2, kind: input, shape index: {}]
  %s3 = inlined_call_operand.vmem [shape: bf16[384,128], index: 3, kind: input, shape index: {}]
  %s4 = inlined_call_operand.vmem [shape: f32[1,128], index: 4, kind: input, shape index: {}]
  %s5 = inlined_call_operand.vmem [shape: bf16[128,128], index: 5, kind: input, shape index: {}]
  %s6 = inlined_call_operand.vmem [shape: f32[1,128], index: 6, kind: input, shape index: {}]
  %s7 = inlined_call_operand.vmem [shape: f32[8,128], index: 7, kind: output, shape index: {}]
  %s8 = sld [smem:[#allocation0]]
  $region38: #{forward.1} parent=0
    _
  %s10 = ssub.s32 1, %s8
  %s11 = scalar_select 0, %s10, %s8
  // Predicated region
  $region2: #{forward.1} parent=0 // pred_check
    _
  $region3: #{forward.1} parent=0 // pred_check_branch
    %13 = sbr.rel (0) target = $region5
  $region4: #{forward.1} parent=0 // pred_region
    _
  $region5: #{forward.1} parent=0 // pred_fallthru
    _
  // Predicated region
  $region6: #{forward.1} parent=0 // pred_check
    _
  $region7: #{forward.1} parent=0 // pred_check_branch
    %15 = sbr.rel (0) target = $region9
  $region8: #{forward.1} parent=0 // pred_region
    _
  $region9: #{forward.1} parent=0 // pred_fallthru
    _
  // Predicated region
  $region10: #{forward.1} parent=0 // pred_check
    _
  $region11: #{forward.1} parent=0 // pred_check_branch
    %17 = sbr.rel (0) target = $region13
  $region12: #{forward.1} parent=0 // pred_region
    _
  $region13: #{forward.1} parent=0 // pred_fallthru
    _
  // Predicated region
  $region14: #{forward.1} parent=0 // pred_check
    _
  $region15: #{forward.1} parent=0 // pred_check_branch
    %19 = sbr.rel (0) target = $region17
  $region16: #{forward.1} parent=0 // pred_region
    _
  $region17: #{forward.1} parent=0 // pred_fallthru
    _
  // Predicated region
  $region18: #{forward.1} parent=0 // pred_check
    _
  $region19: #{forward.1} parent=0 // pred_check_branch
    %21 = sbr.rel (0) target = $region21
  $region20: #{forward.1} parent=0 // pred_region
    _
  $region21: #{forward.1} parent=0 // pred_fallthru
    _
  // Predicated region
  $region22: #{forward.1} parent=0 // pred_check
    _
  $region23: #{forward.1} parent=0 // pred_check_branch
    %23 = sbr.rel (0) target = $region25
  $region24: #{forward.1} parent=0 // pred_region
    _
  $region25: #{forward.1} parent=0 // pred_fallthru
    _
  // Predicated region
  $region26: #{forward.1} parent=0 // pred_check
    _
  $region27: #{forward.1} parent=0 // pred_check_branch
    %25 = sbr.rel (0) target = $region29
  $region28: #{forward.1} parent=0 // pred_region
    _
  $region29: #{forward.1} parent=0 // pred_fallthru
    _
  %v27 = vld [vmem:[%s0] sm:$0xff]
  %v28 = vld [vmem:[%s0 + $0x8] sm:$0xff]
  %v29 = vld [vmem:[%s0 + $0x10] sm:$0xff]
  %v30 = vld [vmem:[%s1] sm:$0xff]
  %v31 = vld [vmem:[%s1 + $0x8] sm:$0xf]
  %v32 = vld [vmem:[%s1 + $0xc] sm:$0xff]
  %v33 = vld [vmem:[%s1 + $0x14] sm:$0xf]
  %v34 = vld [vmem:[%s1 + $0x18] sm:$0xff]
  %v35 = vld [vmem:[%s1 + $0x20] sm:$0xf]
  %v36 = vld [vmem:[%s1 + $0x24] sm:$0xff]
  %v37 = vld [vmem:[%s1 + $0x2c] sm:$0xf]
  %v38 = vld [vmem:[%s1 + $0x30] sm:$0xff]
  %v39 = vld [vmem:[%s1 + $0x38] sm:$0xf]
  %v40 = vld [vmem:[%s1 + $0x3c] sm:$0xff]
  %v41 = vld [vmem:[%s1 + $0x44] sm:$0xf]
  %v42 = vld [vmem:[%s1 + $0x48] sm:$0xff]
  %v43 = vld [vmem:[%s1 + $0x50] sm:$0xf]
  %v44 = vld [vmem:[%s1 + $0x54] sm:$0xff]
  %v45 = vld [vmem:[%s1 + $0x5c] sm:$0xf]
  %v46 = vld [vmem:[%s1 + $0x60] sm:$0xff]
  %v47 = vld [vmem:[%s1 + $0x68] sm:$0xf]
  %v48 = vld [vmem:[%s1 + $0x6c] sm:$0xff]
  %v49 = vld [vmem:[%s1 + $0x74] sm:$0xf]
  %v50 = vld [vmem:[%s1 + $0x78] sm:$0xff]
  %v51 = vld [vmem:[%s1 + $0x80] sm:$0xf]
  %v52 = vld [vmem:[%s1 + $0x84] sm:$0xff]
  %v53 = vld [vmem:[%s1 + $0x8c] sm:$0xf]
  %v54 = vld [vmem:[%s1 + $0x90] sm:$0xff]
  %v55 = vld [vmem:[%s1 + $0x98] sm:$0xf]
  %v56 = vld [vmem:[%s1 + $0x9c] sm:$0xff]
  %v57 = vld [vmem:[%s1 + $0xa4] sm:$0xf]
  %v58 = vld [vmem:[%s1 + $0xa8] sm:$0xff]
  %v59 = vld [vmem:[%s1 + $0xb0] sm:$0xf]
  %v60 = vld [vmem:[%s1 + $0xb4] sm:$0xff]
  %v61 = vld [vmem:[%s1 + $0xbc] sm:$0xf]
  %v62 = vld [vmem:[%s1 + $0xc0] sm:$0xff]
  %v63 = vld [vmem:[%s1 + $0xc8] sm:$0xf]
  %v64 = vld [vmem:[%s1 + $0xcc] sm:$0xff]
  %v65 = vld [vmem:[%s1 + $0xd4] sm:$0xf]
  %v66 = vld [vmem:[%s1 + $0xd8] sm:$0xff]
  %v67 = vld [vmem:[%s1 + $0xe0] sm:$0xf]
  %v68 = vld [vmem:[%s1 + $0xe4] sm:$0xff]
  %v69 = vld [vmem:[%s1 + $0xec] sm:$0xf]
  %v70 = vld [vmem:[%s1 + $0xf0] sm:$0xff]
  %v71 = vld [vmem:[%s1 + $0xf8] sm:$0xf]
  %v72 = vld [vmem:[%s1 + $0xfc] sm:$0xff]
  %v73 = vld [vmem:[%s1 + $0x104] sm:$0xf]
  %v74 = vld [vmem:[%s1 + $0x108] sm:$0xff]
  %v75 = vld [vmem:[%s1 + $0x110] sm:$0xf]
  %v76 = vld [vmem:[%s1 + $0x114] sm:$0xff]
  %v77 = vld [vmem:[%s1 + $0x11c] sm:$0xf]
  %v78 = vld [vmem:[%s1 + $0x120] sm:$0xff]
  %v79 = vld [vmem:[%s1 + $0x128] sm:$0xf]
  %v80 = vld [vmem:[%s1 + $0x12c] sm:$0xff]
  %v81 = vld [vmem:[%s1 + $0x134] sm:$0xf]
  %v82 = vld [vmem:[%s1 + $0x138] sm:$0xff]
  %v83 = vld [vmem:[%s1 + $0x140] sm:$0xf]
  %v84 = vld [vmem:[%s1 + $0x144] sm:$0xff]
  %v85 = vld [vmem:[%s1 + $0x14c] sm:$0xf]
  %v86 = vld [vmem:[%s1 + $0x150] sm:$0xff]
  %v87 = vld [vmem:[%s1 + $0x158] sm:$0xf]
  %v88 = vld [vmem:[%s1 + $0x15c] sm:$0xff]
  %v89 = vld [vmem:[%s1 + $0x164] sm:$0xf]
  %v90 = vld [vmem:[%s1 + $0x168] sm:$0xff]
  %v91 = vld [vmem:[%s1 + $0x170] sm:$0xf]
  %v92 = vld [vmem:[%s1 + $0x174] sm:$0xff]
  %v93 = vld [vmem:[%s1 + $0x17c] sm:$0xf]
  %v94 = vld [vmem:[%s1 + $0x180] sm:$0xff]
  %v95 = vld [vmem:[%s1 + $0x188] sm:$0xf]
  %v96 = vld [vmem:[%s1 + $0x18c] sm:$0xff]
  %v97 = vld [vmem:[%s1 + $0x194] sm:$0xf]
  %v98 = vld [vmem:[%s1 + $0x198] sm:$0xff]
  %v99 = vld [vmem:[%s1 + $0x1a0] sm:$0xf]
  %v100 = vld [vmem:[%s1 + $0x1a4] sm:$0xff]
  %v101 = vld [vmem:[%s1 + $0x1ac] sm:$0xf]
  %v102 = vld [vmem:[%s1 + $0x1b0] sm:$0xff]
  %v103 = vld [vmem:[%s1 + $0x1b8] sm:$0xf]
  %v104 = vld [vmem:[%s1 + $0x1bc] sm:$0xff]
  %v105 = vld [vmem:[%s1 + $0x1c4] sm:$0xf]
  %v106 = vld [vmem:[%s1 + $0x1c8] sm:$0xff]
  %v107 = vld [vmem:[%s1 + $0x1d0] sm:$0xf]
  %v108 = vld [vmem:[%s1 + $0x1d4] sm:$0xff]
  %v109 = vld [vmem:[%s1 + $0x1dc] sm:$0xf]
  %v110 = vld [vmem:[%s1 + $0x1e0] sm:$0xff]
  %v111 = vld [vmem:[%s1 + $0x1e8] sm:$0xf]
  %v112 = vld [vmem:[%s1 + $0x1ec] sm:$0xff]
  %v113 = vld [vmem:[%s1 + $0x1f4] sm:$0xf]
  %v114 = vld [vmem:[%s1 + $0x1f8] sm:$0xff]
  %v115 = vld [vmem:[%s1 + $0x200] sm:$0xf]
  %v116 = vld [vmem:[%s1 + $0x204] sm:$0xff]
  %v117 = vld [vmem:[%s1 + $0x20c] sm:$0xf]
  %v118 = vld [vmem:[%s1 + $0x210] sm:$0xff]
  %v119 = vld [vmem:[%s1 + $0x218] sm:$0xf]
  %v120 = vld [vmem:[%s1 + $0x21c] sm:$0xff]
  %v121 = vld [vmem:[%s1 + $0x224] sm:$0xf]
  %v122 = vld [vmem:[%s1 + $0x228] sm:$0xff]
  %v123 = vld [vmem:[%s1 + $0x230] sm:$0xf]
  %v124 = vld [vmem:[%s1 + $0x234] sm:$0xff]
  %v125 = vld [vmem:[%s1 + $0x23c] sm:$0xf]
  %v126 = vld [vmem:[%s1 + $0x240] sm:$0xff]
  %v127 = vld [vmem:[%s1 + $0x248] sm:$0xf]
  %v128 = vld [vmem:[%s1 + $0x24c] sm:$0xff]
  %v129 = vld [vmem:[%s1 + $0x254] sm:$0xf]
  %v130 = vld [vmem:[%s1 + $0x258] sm:$0xff]
  %v131 = vld [vmem:[%s1 + $0x260] sm:$0xf]
  %v132 = vld [vmem:[%s1 + $0x264] sm:$0xff]
  %v133 = vld [vmem:[%s1 + $0x26c] sm:$0xf]
  %v134 = vld [vmem:[%s1 + $0x270] sm:$0xff]
  %v135 = vld [vmem:[%s1 + $0x278] sm:$0xf]
  %v136 = vld [vmem:[%s1 + $0x27c] sm:$0xff]
  %v137 = vld [vmem:[%s1 + $0x284] sm:$0xf]
  %v138 = vld [vmem:[%s1 + $0x288] sm:$0xff]
  %v139 = vld [vmem:[%s1 + $0x290] sm:$0xf]
  %v140 = vld [vmem:[%s1 + $0x294] sm:$0xff]
  %v141 = vld [vmem:[%s1 + $0x29c] sm:$0xf]
  %v142 = vld [vmem:[%s1 + $0x2a0] sm:$0xff]
  %v143 = vld [vmem:[%s1 + $0x2a8] sm:$0xf]
  %v144 = vld [vmem:[%s1 + $0x2ac] sm:$0xff]
  %v145 = vld [vmem:[%s1 + $0x2b4] sm:$0xf]
  %v146 = vld [vmem:[%s1 + $0x2b8] sm:$0xff]
  %v147 = vld [vmem:[%s1 + $0x2c0] sm:$0xf]
  %v148 = vld [vmem:[%s1 + $0x2c4] sm:$0xff]
  %v149 = vld [vmem:[%s1 + $0x2cc] sm:$0xf]
  %v150 = vld [vmem:[%s1 + $0x2d0] sm:$0xff]
  %v151 = vld [vmem:[%s1 + $0x2d8] sm:$0xf]
  %v152 = vld [vmem:[%s1 + $0x2dc] sm:$0xff]
  %v153 = vld [vmem:[%s1 + $0x2e4] sm:$0xf]
  %v154 = vld [vmem:[%s1 + $0x2e8] sm:$0xff]
  %v155 = vld [vmem:[%s1 + $0x2f0] sm:$0xf]
  %v156 = vld [vmem:[%s1 + $0x2f4] sm:$0xff]
  %v157 = vld [vmem:[%s1 + $0x2fc] sm:$0xf]
  %v158 = vld [vmem:[%s1 + $0x300] sm:$0xff]
  %v159 = vld [vmem:[%s1 + $0x308] sm:$0xf]
  %v160 = vld [vmem:[%s1 + $0x30c] sm:$0xff]
  %v161 = vld [vmem:[%s1 + $0x314] sm:$0xf]
  %v162 = vld [vmem:[%s1 + $0x318] sm:$0xff]
  %v163 = vld [vmem:[%s1 + $0x320] sm:$0xf]
  %v164 = vld [vmem:[%s1 + $0x324] sm:$0xff]
  %v165 = vld [vmem:[%s1 + $0x32c] sm:$0xf]
  %v166 = vld [vmem:[%s1 + $0x330] sm:$0xff]
  %v167 = vld [vmem:[%s1 + $0x338] sm:$0xf]
  %v168 = vld [vmem:[%s1 + $0x33c] sm:$0xff]
  %v169 = vld [vmem:[%s1 + $0x344] sm:$0xf]
  %v170 = vld [vmem:[%s1 + $0x348] sm:$0xff]
  %v171 = vld [vmem:[%s1 + $0x350] sm:$0xf]
  %v172 = vld [vmem:[%s1 + $0x354] sm:$0xff]
  %v173 = vld [vmem:[%s1 + $0x35c] sm:$0xf]
  %v174 = vld [vmem:[%s1 + $0x360] sm:$0xff]
  %v175 = vld [vmem:[%s1 + $0x368] sm:$0xf]
  %v176 = vld [vmem:[%s1 + $0x36c] sm:$0xff]
  %v177 = vld [vmem:[%s1 + $0x374] sm:$0xf]
  %v178 = vld [vmem:[%s1 + $0x378] sm:$0xff]
  %v179 = vld [vmem:[%s1 + $0x380] sm:$0xf]
  %v180 = vld [vmem:[%s1 + $0x384] sm:$0xff]
  %v181 = vld [vmem:[%s1 + $0x38c] sm:$0xf]
  %v182 = vld [vmem:[%s1 + $0x390] sm:$0xff]
  %v183 = vld [vmem:[%s1 + $0x398] sm:$0xf]
  %v184 = vld [vmem:[%s1 + $0x39c] sm:$0xff]
  %v185 = vld [vmem:[%s1 + $0x3a4] sm:$0xf]
  %v186 = vld [vmem:[%s1 + $0x3a8] sm:$0xff]
  %v187 = vld [vmem:[%s1 + $0x3b0] sm:$0xf]
  %v188 = vld [vmem:[%s1 + $0x3b4] sm:$0xff]
  %v189 = vld [vmem:[%s1 + $0x3bc] sm:$0xf]
  %v190 = vld [vmem:[%s1 + $0x3c0] sm:$0xff]
  %v191 = vld [vmem:[%s1 + $0x3c8] sm:$0xf]
  %v192 = vld [vmem:[%s1 + $0x3cc] sm:$0xff]
  %v193 = vld [vmem:[%s1 + $0x3d4] sm:$0xf]
  %v194 = vld [vmem:[%s1 + $0x3d8] sm:$0xff]
  %v195 = vld [vmem:[%s1 + $0x3e0] sm:$0xf]
  %v196 = vld [vmem:[%s1 + $0x3e4] sm:$0xff]
  %v197 = vld [vmem:[%s1 + $0x3ec] sm:$0xf]
  %v198 = vld [vmem:[%s1 + $0x3f0] sm:$0xff]
  %v199 = vld [vmem:[%s1 + $0x3f8] sm:$0xf]
  %v200 = vld [vmem:[%s1 + $0x3fc] sm:$0xff]
  %v201 = vld [vmem:[%s1 + $0x404] sm:$0xf]
  %v202 = vld [vmem:[%s1 + $0x408] sm:$0xff]
  %v203 = vld [vmem:[%s1 + $0x410] sm:$0xf]
  %v204 = vld [vmem:[%s1 + $0x414] sm:$0xff]
  %v205 = vld [vmem:[%s1 + $0x41c] sm:$0xf]
  %v206 = vld [vmem:[%s1 + $0x420] sm:$0xff]
  %v207 = vld [vmem:[%s1 + $0x428] sm:$0xf]
  %v208 = vld [vmem:[%s1 + $0x42c] sm:$0xff]
  %v209 = vld [vmem:[%s1 + $0x434] sm:$0xf]
  %v210 = vld [vmem:[%s1 + $0x438] sm:$0xff]
  %v211 = vld [vmem:[%s1 + $0x440] sm:$0xf]
  %v212 = vld [vmem:[%s1 + $0x444] sm:$0xff]
  %v213 = vld [vmem:[%s1 + $0x44c] sm:$0xf]
  %v214 = vld [vmem:[%s1 + $0x450] sm:$0xff]
  %v215 = vld [vmem:[%s1 + $0x458] sm:$0xf]
  %v216 = vld [vmem:[%s1 + $0x45c] sm:$0xff]
  %v217 = vld [vmem:[%s1 + $0x464] sm:$0xf]
  %v218 = vld [vmem:[%s1 + $0x468] sm:$0xff]
  %v219 = vld [vmem:[%s1 + $0x470] sm:$0xf]
  %v220 = vld [vmem:[%s1 + $0x474] sm:$0xff]
  %v221 = vld [vmem:[%s1 + $0x47c] sm:$0xf]
  %v222 = vld [vmem:[%s2] sm:$0x7]
  %v224 = vlaneseq
  %v225 = vshrl.u32 %v224, 7
  %v226 = vsub.s32 0, %v225
  %v227 = vrot.slane %v222, %v226
  %v228 = vlaneseq
  %v229 = vshrl.u32 %v228, 7
  %v230 = vsub.s32 1, %v229
  %v231 = vrot.slane %v222, %v230
  %v232 = vlaneseq
  %v233 = vshrl.u32 %v232, 7
  %v234 = vsub.s32 2, %v233
  %v235 = vrot.slane %v222, %v234
  %v242 = vunpack.c.l.b16 %v27
  %v243 = vunpack.c.h.b16 %v27
  %v244 = vunpack.c.l.b16 %v28
  %v245 = vunpack.c.h.b16 %v28
  %v246 = vunpack.c.l.b16 %v29
  %v247 = vunpack.c.h.b16 %v29
  %v248 = vpack.c.b16 %v242, %v242
  %v249 = vpack.c.b16 %v243, %v243
  %v250 = vpack.c.b16 %v244, %v244
  %v251 = vpack.c.b16 %v245, %v245
  %v252 = vpack.c.b16 %v246, %v246
  %v253 = vpack.c.b16 %v247, %v247
  %v452 = vunpack.c.l.b16 %v30
  %v453 = vunpack.c.h.b16 %v30
  %v454 = vunpack.c.l.b16 %v31
  %v455 = vunpack.c.l.b16 %v32
  %v456 = vunpack.c.h.b16 %v32
  %v457 = vunpack.c.l.b16 %v33
  %v458 = vunpack.c.l.b16 %v34
  %v459 = vunpack.c.h.b16 %v34
  %v460 = vunpack.c.l.b16 %v35
  %v461 = vunpack.c.l.b16 %v36
  %v462 = vunpack.c.h.b16 %v36
  %v463 = vunpack.c.l.b16 %v37
  %v464 = vunpack.c.l.b16 %v38
  %v465 = vunpack.c.h.b16 %v38
  %v466 = vunpack.c.l.b16 %v39
  %v467 = vunpack.c.l.b16 %v40
  %v468 = vunpack.c.h.b16 %v40
  %v469 = vunpack.c.l.b16 %v41
  %v470 = vunpack.c.l.b16 %v42
  %v471 = vunpack.c.h.b16 %v42
  %v472 = vunpack.c.l.b16 %v43
  %v473 = vunpack.c.l.b16 %v44
  %v474 = vunpack.c.h.b16 %v44
  %v475 = vunpack.c.l.b16 %v45
  %v476 = vunpack.c.l.b16 %v46
  %v477 = vunpack.c.h.b16 %v46
  %v478 = vunpack.c.l.b16 %v47
  %v479 = vunpack.c.l.b16 %v48
  %v480 = vunpack.c.h.b16 %v48
  %v481 = vunpack.c.l.b16 %v49
  %v482 = vunpack.c.l.b16 %v50
  %v483 = vunpack.c.h.b16 %v50
  %v484 = vunpack.c.l.b16 %v51
  %v485 = vunpack.c.l.b16 %v52
  %v486 = vunpack.c.h.b16 %v52
  %v487 = vunpack.c.l.b16 %v53
  %v488 = vunpack.c.l.b16 %v54
  %v489 = vunpack.c.h.b16 %v54
  %v490 = vunpack.c.l.b16 %v55
  %v491 = vunpack.c.l.b16 %v56
  %v492 = vunpack.c.h.b16 %v56
  %v493 = vunpack.c.l.b16 %v57
  %v494 = vunpack.c.l.b16 %v58
  %v495 = vunpack.c.h.b16 %v58
  %v496 = vunpack.c.l.b16 %v59
  %v497 = vunpack.c.l.b16 %v60
  %v498 = vunpack.c.h.b16 %v60
  %v499 = vunpack.c.l.b16 %v61
  %v500 = vunpack.c.l.b16 %v62
  %v501 = vunpack.c.h.b16 %v62
  %v502 = vunpack.c.l.b16 %v63
  %v503 = vunpack.c.l.b16 %v64
  %v504 = vunpack.c.h.b16 %v64
  %v505 = vunpack.c.l.b16 %v65
  %v506 = vunpack.c.l.b16 %v66
  %v507 = vunpack.c.h.b16 %v66
  %v508 = vunpack.c.l.b16 %v67
  %v509 = vunpack.c.l.b16 %v68
  %v510 = vunpack.c.h.b16 %v68
  %v511 = vunpack.c.l.b16 %v69
  %v512 = vunpack.c.l.b16 %v70
  %v513 = vunpack.c.h.b16 %v70
  %v514 = vunpack.c.l.b16 %v71
  %v515 = vunpack.c.l.b16 %v72
  %v516 = vunpack.c.h.b16 %v72
  %v517 = vunpack.c.l.b16 %v73
  %v518 = vunpack.c.l.b16 %v74
  %v519 = vunpack.c.h.b16 %v74
  %v520 = vunpack.c.l.b16 %v75
  %v521 = vunpack.c.l.b16 %v76
  %v522 = vunpack.c.h.b16 %v76
  %v523 = vunpack.c.l.b16 %v77
  %v524 = vunpack.c.l.b16 %v78
  %v525 = vunpack.c.h.b16 %v78
  %v526 = vunpack.c.l.b16 %v79
  %v527 = vunpack.c.l.b16 %v80
  %v528 = vunpack.c.h.b16 %v80
  %v529 = vunpack.c.l.b16 %v81
  %v530 = vunpack.c.l.b16 %v82
  %v531 = vunpack.c.h.b16 %v82
  %v532 = vunpack.c.l.b16 %v83
  %v533 = vunpack.c.l.b16 %v84
  %v534 = vunpack.c.h.b16 %v84
  %v535 = vunpack.c.l.b16 %v85
  %v536 = vunpack.c.l.b16 %v86
  %v537 = vunpack.c.h.b16 %v86
  %v538 = vunpack.c.l.b16 %v87
  %v539 = vunpack.c.l.b16 %v88
  %v540 = vunpack.c.h.b16 %v88
  %v541 = vunpack.c.l.b16 %v89
  %v542 = vunpack.c.l.b16 %v90
  %v543 = vunpack.c.h.b16 %v90
  %v544 = vunpack.c.l.b16 %v91
  %v545 = vunpack.c.l.b16 %v92
  %v546 = vunpack.c.h.b16 %v92
  %v547 = vunpack.c.l.b16 %v93
  %v548 = vunpack.c.l.b16 %v94
  %v549 = vunpack.c.h.b16 %v94
  %v550 = vunpack.c.l.b16 %v95
  %v551 = vunpack.c.l.b16 %v96
  %v552 = vunpack.c.h.b16 %v96
  %v553 = vunpack.c.l.b16 %v97
  %v554 = vunpack.c.l.b16 %v98
  %v555 = vunpack.c.h.b16 %v98
  %v556 = vunpack.c.l.b16 %v99
  %v557 = vunpack.c.l.b16 %v100
  %v558 = vunpack.c.h.b16 %v100
  %v559 = vunpack.c.l.b16 %v101
  %v560 = vunpack.c.l.b16 %v102
  %v561 = vunpack.c.h.b16 %v102
  %v562 = vunpack.c.l.b16 %v103
  %v563 = vunpack.c.l.b16 %v104
  %v564 = vunpack.c.h.b16 %v104
  %v565 = vunpack.c.l.b16 %v105
  %v566 = vunpack.c.l.b16 %v106
  %v567 = vunpack.c.h.b16 %v106
  %v568 = vunpack.c.l.b16 %v107
  %v569 = vunpack.c.l.b16 %v108
  %v570 = vunpack.c.h.b16 %v108
  %v571 = vunpack.c.l.b16 %v109
  %v572 = vunpack.c.l.b16 %v110
  %v573 = vunpack.c.h.b16 %v110
  %v574 = vunpack.c.l.b16 %v111
  %v575 = vunpack.c.l.b16 %v112
  %v576 = vunpack.c.h.b16 %v112
  %v577 = vunpack.c.l.b16 %v113
  %v578 = vunpack.c.l.b16 %v114
  %v579 = vunpack.c.h.b16 %v114
  %v580 = vunpack.c.l.b16 %v115
  %v581 = vunpack.c.l.b16 %v116
  %v582 = vunpack.c.h.b16 %v116
  %v583 = vunpack.c.l.b16 %v117
  %v584 = vunpack.c.l.b16 %v118
  %v585 = vunpack.c.h.b16 %v118
  %v586 = vunpack.c.l.b16 %v119
  %v587 = vunpack.c.l.b16 %v120
  %v588 = vunpack.c.h.b16 %v120
  %v589 = vunpack.c.l.b16 %v121
  %v590 = vunpack.c.l.b16 %v122
  %v591 = vunpack.c.h.b16 %v122
  %v592 = vunpack.c.l.b16 %v123
  %v593 = vunpack.c.l.b16 %v124
  %v594 = vunpack.c.h.b16 %v124
  %v595 = vunpack.c.l.b16 %v125
  %v596 = vunpack.c.l.b16 %v126
  %v597 = vunpack.c.h.b16 %v126
  %v598 = vunpack.c.l.b16 %v127
  %v599 = vunpack.c.l.b16 %v128
  %v600 = vunpack.c.h.b16 %v128
  %v601 = vunpack.c.l.b16 %v129
  %v602 = vunpack.c.l.b16 %v130
  %v603 = vunpack.c.h.b16 %v130
  %v604 = vunpack.c.l.b16 %v131
  %v605 = vunpack.c.l.b16 %v132
  %v606 = vunpack.c.h.b16 %v132
  %v607 = vunpack.c.l.b16 %v133
  %v608 = vunpack.c.l.b16 %v134
  %v609 = vunpack.c.h.b16 %v134
  %v610 = vunpack.c.l.b16 %v135
  %v611 = vunpack.c.l.b16 %v136
  %v612 = vunpack.c.h.b16 %v136
  %v613 = vunpack.c.l.b16 %v137
  %v614 = vunpack.c.l.b16 %v138
  %v615 = vunpack.c.h.b16 %v138
  %v616 = vunpack.c.l.b16 %v139
  %v617 = vunpack.c.l.b16 %v140
  %v618 = vunpack.c.h.b16 %v140
  %v619 = vunpack.c.l.b16 %v141
  %v620 = vunpack.c.l.b16 %v142
  %v621 = vunpack.c.h.b16 %v142
  %v622 = vunpack.c.l.b16 %v143
  %v623 = vunpack.c.l.b16 %v144
  %v624 = vunpack.c.h.b16 %v144
  %v625 = vunpack.c.l.b16 %v145
  %v626 = vunpack.c.l.b16 %v146
  %v627 = vunpack.c.h.b16 %v146
  %v628 = vunpack.c.l.b16 %v147
  %v629 = vunpack.c.l.b16 %v148
  %v630 = vunpack.c.h.b16 %v148
  %v631 = vunpack.c.l.b16 %v149
  %v632 = vunpack.c.l.b16 %v150
  %v633 = vunpack.c.h.b16 %v150
  %v634 = vunpack.c.l.b16 %v151
  %v635 = vunpack.c.l.b16 %v152
  %v636 = vunpack.c.h.b16 %v152
  %v637 = vunpack.c.l.b16 %v153
  %v638 = vunpack.c.l.b16 %v154
  %v639 = vunpack.c.h.b16 %v154
  %v640 = vunpack.c.l.b16 %v155
  %v641 = vunpack.c.l.b16 %v156
  %v642 = vunpack.c.h.b16 %v156
  %v643 = vunpack.c.l.b16 %v157
  %v644 = vunpack.c.l.b16 %v158
  %v645 = vunpack.c.h.b16 %v158
  %v646 = vunpack.c.l.b16 %v159
  %v647 = vunpack.c.l.b16 %v160
  %v648 = vunpack.c.h.b16 %v160
  %v649 = vunpack.c.l.b16 %v161
  %v650 = vunpack.c.l.b16 %v162
  %v651 = vunpack.c.h.b16 %v162
  %v652 = vunpack.c.l.b16 %v163
  %v653 = vunpack.c.l.b16 %v164
  %v654 = vunpack.c.h.b16 %v164
  %v655 = vunpack.c.l.b16 %v165
  %v656 = vunpack.c.l.b16 %v166
  %v657 = vunpack.c.h.b16 %v166
  %v658 = vunpack.c.l.b16 %v167
  %v659 = vunpack.c.l.b16 %v168
  %v660 = vunpack.c.h.b16 %v168
  %v661 = vunpack.c.l.b16 %v169
  %v662 = vunpack.c.l.b16 %v170
  %v663 = vunpack.c.h.b16 %v170
  %v664 = vunpack.c.l.b16 %v171
  %v665 = vunpack.c.l.b16 %v172
  %v666 = vunpack.c.h.b16 %v172
  %v667 = vunpack.c.l.b16 %v173
  %v668 = vunpack.c.l.b16 %v174
  %v669 = vunpack.c.h.b16 %v174
  %v670 = vunpack.c.l.b16 %v175
  %v671 = vunpack.c.l.b16 %v176
  %v672 = vunpack.c.h.b16 %v176
  %v673 = vunpack.c.l.b16 %v177
  %v674 = vunpack.c.l.b16 %v178
  %v675 = vunpack.c.h.b16 %v178
  %v676 = vunpack.c.l.b16 %v179
  %v677 = vunpack.c.l.b16 %v180
  %v678 = vunpack.c.h.b16 %v180
  %v679 = vunpack.c.l.b16 %v181
  %v680 = vunpack.c.l.b16 %v182
  %v681 = vunpack.c.h.b16 %v182
  %v682 = vunpack.c.l.b16 %v183
  %v683 = vunpack.c.l.b16 %v184
  %v684 = vunpack.c.h.b16 %v184
  %v685 = vunpack.c.l.b16 %v185
  %v686 = vunpack.c.l.b16 %v186
  %v687 = vunpack.c.h.b16 %v186
  %v688 = vunpack.c.l.b16 %v187
  %v689 = vunpack.c.l.b16 %v188
  %v690 = vunpack.c.h.b16 %v188
  %v691 = vunpack.c.l.b16 %v189
  %v692 = vunpack.c.l.b16 %v190
  %v693 = vunpack.c.h.b16 %v190
  %v694 = vunpack.c.l.b16 %v191
  %v695 = vunpack.c.l.b16 %v192
  %v696 = vunpack.c.h.b16 %v192
  %v697 = vunpack.c.l.b16 %v193
  %v698 = vunpack.c.l.b16 %v194
  %v699 = vunpack.c.h.b16 %v194
  %v700 = vunpack.c.l.b16 %v195
  %v701 = vunpack.c.l.b16 %v196
  %v702 = vunpack.c.h.b16 %v196
  %v703 = vunpack.c.l.b16 %v197
  %v704 = vunpack.c.l.b16 %v198
  %v705 = vunpack.c.h.b16 %v198
  %v706 = vunpack.c.l.b16 %v199
  %v707 = vunpack.c.l.b16 %v200
  %v708 = vunpack.c.h.b16 %v200
  %v709 = vunpack.c.l.b16 %v201
  %v710 = vunpack.c.l.b16 %v202
  %v711 = vunpack.c.h.b16 %v202
  %v712 = vunpack.c.l.b16 %v203
  %v713 = vunpack.c.l.b16 %v204
  %v714 = vunpack.c.h.b16 %v204
  %v715 = vunpack.c.l.b16 %v205
  %v716 = vunpack.c.l.b16 %v206
  %v717 = vunpack.c.h.b16 %v206
  %v718 = vunpack.c.l.b16 %v207
  %v719 = vunpack.c.l.b16 %v208
  %v720 = vunpack.c.h.b16 %v208
  %v721 = vunpack.c.l.b16 %v209
  %v722 = vunpack.c.l.b16 %v210
  %v723 = vunpack.c.h.b16 %v210
  %v724 = vunpack.c.l.b16 %v211
  %v725 = vunpack.c.l.b16 %v212
  %v726 = vunpack.c.h.b16 %v212
  %v727 = vunpack.c.l.b16 %v213
  %v728 = vunpack.c.l.b16 %v214
  %v729 = vunpack.c.h.b16 %v214
  %v730 = vunpack.c.l.b16 %v215
  %v731 = vunpack.c.l.b16 %v216
  %v732 = vunpack.c.h.b16 %v216
  %v733 = vunpack.c.l.b16 %v217
  %v734 = vunpack.c.l.b16 %v218
  %v735 = vunpack.c.h.b16 %v218
  %v736 = vunpack.c.l.b16 %v219
  %v737 = vunpack.c.l.b16 %v220
  %v738 = vunpack.c.h.b16 %v220
  %v739 = vunpack.c.l.b16 %v221
  %v740 = vpack.c.b16 %v455, %v452
  %v741 = vpack.c.b16 %v456, %v453
  %v742 = vpack.c.b16 %v457, %v454
  %v743 = vpack.c.b16 %v461, %v458
  %v744 = vpack.c.b16 %v462, %v459
  %v745 = vpack.c.b16 %v463, %v460
  %v746 = vpack.c.b16 %v467, %v464
  %v747 = vpack.c.b16 %v468, %v465
  %v748 = vpack.c.b16 %v469, %v466
  %v749 = vpack.c.b16 %v473, %v470
  %v750 = vpack.c.b16 %v474, %v471
  %v751 = vpack.c.b16 %v475, %v472
  %v752 = vpack.c.b16 %v479, %v476
  %v753 = vpack.c.b16 %v480, %v477
  %v754 = vpack.c.b16 %v481, %v478
  %v755 = vpack.c.b16 %v485, %v482
  %v756 = vpack.c.b16 %v486, %v483
  %v757 = vpack.c.b16 %v487, %v484
  %v758 = vpack.c.b16 %v491, %v488
  %v759 = vpack.c.b16 %v492, %v489
  %v760 = vpack.c.b16 %v493, %v490
  %v761 = vpack.c.b16 %v497, %v494
  %v762 = vpack.c.b16 %v498, %v495
  %v763 = vpack.c.b16 %v499, %v496
  %v764 = vpack.c.b16 %v503, %v500
  %v765 = vpack.c.b16 %v504, %v501
  %v766 = vpack.c.b16 %v505, %v502
  %v767 = vpack.c.b16 %v509, %v506
  %v768 = vpack.c.b16 %v510, %v507
  %v769 = vpack.c.b16 %v511, %v508
  %v770 = vpack.c.b16 %v515, %v512
  %v771 = vpack.c.b16 %v516, %v513
  %v772 = vpack.c.b16 %v517, %v514
  %v773 = vpack.c.b16 %v521, %v518
  %v774 = vpack.c.b16 %v522, %v519
  %v775 = vpack.c.b16 %v523, %v520
  %v776 = vpack.c.b16 %v527, %v524
  %v777 = vpack.c.b16 %v528, %v525
  %v778 = vpack.c.b16 %v529, %v526
  %v779 = vpack.c.b16 %v533, %v530
  %v780 = vpack.c.b16 %v534, %v531
  %v781 = vpack.c.b16 %v535, %v532
  %v782 = vpack.c.b16 %v539, %v536
  %v783 = vpack.c.b16 %v540, %v537
  %v784 = vpack.c.b16 %v541, %v538
  %v785 = vpack.c.b16 %v545, %v542
  %v786 = vpack.c.b16 %v546, %v543
  %v787 = vpack.c.b16 %v547, %v544
  %v788 = vpack.c.b16 %v551, %v548
  %v789 = vpack.c.b16 %v552, %v549
  %v790 = vpack.c.b16 %v553, %v550
  %v791 = vpack.c.b16 %v557, %v554
  %v792 = vpack.c.b16 %v558, %v555
  %v793 = vpack.c.b16 %v559, %v556
  %v794 = vpack.c.b16 %v563, %v560
  %v795 = vpack.c.b16 %v564, %v561
  %v796 = vpack.c.b16 %v565, %v562
  %v797 = vpack.c.b16 %v569, %v566
  %v798 = vpack.c.b16 %v570, %v567
  %v799 = vpack.c.b16 %v571, %v568
  %v800 = vpack.c.b16 %v575, %v572
  %v801 = vpack.c.b16 %v576, %v573
  %v802 = vpack.c.b16 %v577, %v574
  %v803 = vpack.c.b16 %v581, %v578
  %v804 = vpack.c.b16 %v582, %v579
  %v805 = vpack.c.b16 %v583, %v580
  %v806 = vpack.c.b16 %v587, %v584
  %v807 = vpack.c.b16 %v588, %v585
  %v808 = vpack.c.b16 %v589, %v586
  %v809 = vpack.c.b16 %v593, %v590
  %v810 = vpack.c.b16 %v594, %v591
  %v811 = vpack.c.b16 %v595, %v592
  %v812 = vpack.c.b16 %v599, %v596
  %v813 = vpack.c.b16 %v600, %v597
  %v814 = vpack.c.b16 %v601, %v598
  %v815 = vpack.c.b16 %v605, %v602
  %v816 = vpack.c.b16 %v606, %v603
  %v817 = vpack.c.b16 %v607, %v604
  %v818 = vpack.c.b16 %v611, %v608
  %v819 = vpack.c.b16 %v612, %v609
  %v820 = vpack.c.b16 %v613, %v610
  %v821 = vpack.c.b16 %v617, %v614
  %v822 = vpack.c.b16 %v618, %v615
  %v823 = vpack.c.b16 %v619, %v616
  %v824 = vpack.c.b16 %v623, %v620
  %v825 = vpack.c.b16 %v624, %v621
  %v826 = vpack.c.b16 %v625, %v622
  %v827 = vpack.c.b16 %v629, %v626
  %v828 = vpack.c.b16 %v630, %v627
  %v829 = vpack.c.b16 %v631, %v628
  %v830 = vpack.c.b16 %v635, %v632
  %v831 = vpack.c.b16 %v636, %v633
  %v832 = vpack.c.b16 %v637, %v634
  %v833 = vpack.c.b16 %v641, %v638
  %v834 = vpack.c.b16 %v642, %v639
  %v835 = vpack.c.b16 %v643, %v640
  %v836 = vpack.c.b16 %v647, %v644
  %v837 = vpack.c.b16 %v648, %v645
  %v838 = vpack.c.b16 %v649, %v646
  %v839 = vpack.c.b16 %v653, %v650
  %v840 = vpack.c.b16 %v654, %v651
  %v841 = vpack.c.b16 %v655, %v652
  %v842 = vpack.c.b16 %v659, %v656
  %v843 = vpack.c.b16 %v660, %v657
  %v844 = vpack.c.b16 %v661, %v658
  %v845 = vpack.c.b16 %v665, %v662
  %v846 = vpack.c.b16 %v666, %v663
  %v847 = vpack.c.b16 %v667, %v664
  %v848 = vpack.c.b16 %v671, %v668
  %v849 = vpack.c.b16 %v672, %v669
  %v850 = vpack.c.b16 %v673, %v670
  %v851 = vpack.c.b16 %v677, %v674
  %v852 = vpack.c.b16 %v678, %v675
  %v853 = vpack.c.b16 %v679, %v676
  %v854 = vpack.c.b16 %v683, %v680
  %v855 = vpack.c.b16 %v684, %v681
  %v856 = vpack.c.b16 %v685, %v682
  %v857 = vpack.c.b16 %v689, %v686
  %v858 = vpack.c.b16 %v690, %v687
  %v859 = vpack.c.b16 %v691, %v688
  %v860 = vpack.c.b16 %v695, %v692
  %v861 = vpack.c.b16 %v696, %v693
  %v862 = vpack.c.b16 %v697, %v694
  %v863 = vpack.c.b16 %v701, %v698
  %v864 = vpack.c.b16 %v702, %v699
  %v865 = vpack.c.b16 %v703, %v700
  %v866 = vpack.c.b16 %v707, %v704
  %v867 = vpack.c.b16 %v708, %v705
  %v868 = vpack.c.b16 %v709, %v706
  %v869 = vpack.c.b16 %v713, %v710
  %v870 = vpack.c.b16 %v714, %v711
  %v871 = vpack.c.b16 %v715, %v712
  %v872 = vpack.c.b16 %v719, %v716
  %v873 = vpack.c.b16 %v720, %v717
  %v874 = vpack.c.b16 %v721, %v718
  %v875 = vpack.c.b16 %v725, %v722
  %v876 = vpack.c.b16 %v726, %v723
  %v877 = vpack.c.b16 %v727, %v724
  %v878 = vpack.c.b16 %v731, %v728
  %v879 = vpack.c.b16 %v732, %v729
  %v880 = vpack.c.b16 %v733, %v730
  %v881 = vpack.c.b16 %v737, %v734
  %v882 = vpack.c.b16 %v738, %v735
  %v883 = vpack.c.b16 %v739, %v736
  %1028 = vmatprep.subr.bf16.mxu0 %v762
  %1029 = vmatpush1.bf16.msra.mxu0 %v761
  %1030 = vmatprep.subr.bf16.mxu0 %v759
  %1031 = vmatpush1.bf16.msra.mxu0 %v758
  %1032 = vmatprep.subr.bf16.mxu0 %v756
  %1033 = vmatpush1.bf16.msra.mxu0 %v755
  %1034 = vmatprep.subr.bf16.mxu0 %v753
  %1035 = vmatpush1.bf16.msra.mxu0 %v752
  %1036 = vmatprep.subr.bf16.mxu0 %v750
  %1037 = vmatpush1.bf16.msra.mxu0 %v749
  %1038 = vmatprep.subr.bf16.mxu0 %v747
  %1039 = vmatpush1.bf16.msra.mxu0 %v746
  %1040 = vmatprep.subr.bf16.mxu0 %v744
  %1041 = vmatpush1.bf16.msra.mxu0 %v743
  %1042 = vmatprep.subr.bf16.mxu0 %v741
  %1043 = vmatpush1.bf16.msra.mxu0 %v740
  %1044 = vmatprep.subr.bf16.mxu0 %v786
  %1045 = vmatpush2.bf16.msra.mxu0 %v785
  %1046 = vmatprep.subr.bf16.mxu0 %v783
  %1047 = vmatpush2.bf16.msra.mxu0 %v782
  %1048 = vmatprep.subr.bf16.mxu0 %v780
  %1049 = vmatpush2.bf16.msra.mxu0 %v779
  %1050 = vmatprep.subr.bf16.mxu0 %v777
  %1051 = vmatpush2.bf16.msra.mxu0 %v776
  %1052 = vmatprep.subr.bf16.mxu0 %v774
  %1053 = vmatpush2.bf16.msra.mxu0 %v773
  %1054 = vmatprep.subr.bf16.mxu0 %v771
  %1055 = vmatpush2.bf16.msra.mxu0 %v770
  %1056 = vmatprep.subr.bf16.mxu0 %v768
  %1057 = vmatpush2.bf16.msra.mxu0 %v767
  %1058 = vmatprep.subr.bf16.mxu0 %v765
  %1059 = vmatpush2.bf16.msra.mxu0 %v764
  %1060 = vmatprep.mubr.bf16.mxu0 %v249
  %1061 = vmatmul.mubr.bf16.gmra.mxu0 %v248
  %v1062 = vpop.f32.mrf.mxu0
  %v1063 = vadd.f32 %v227, %v1062
  %v1064 = vpop.f32.mrf.mxu0
  %v1065 = vadd.f32 %v231, %v1064
  %v1066 = vpop.f32.mrf.mxu0
  %v1067 = vpop.f32.mrf.mxu0
  %1068 = vdwg.mxu0
  %1069 = vmatprep.subr.bf16.mxu0 %v810
  %1070 = vmatpush1.bf16.msra.mxu0 %v809
  %1071 = vmatprep.subr.bf16.mxu0 %v807
  %1072 = vmatpush1.bf16.msra.mxu0 %v806
  %1073 = vmatprep.subr.bf16.mxu0 %v804
  %1074 = vmatpush1.bf16.msra.mxu0 %v803
  %1075 = vmatprep.subr.bf16.mxu0 %v801
  %1076 = vmatpush1.bf16.msra.mxu0 %v800
  %1077 = vmatprep.subr.bf16.mxu0 %v798
  %1078 = vmatpush1.bf16.msra.mxu0 %v797
  %1079 = vmatprep.subr.bf16.mxu0 %v795
  %1080 = vmatpush1.bf16.msra.mxu0 %v794
  %1081 = vmatprep.subr.bf16.mxu0 %v792
  %1082 = vmatpush1.bf16.msra.mxu0 %v791
  %1083 = vmatprep.subr.bf16.mxu0 %v789
  %1084 = vmatpush1.bf16.msra.mxu0 %v788
  %1085 = vmatprep.subr.bf16.mxu0 %v834
  %1086 = vmatpush2.bf16.msra.mxu0 %v833
  %1087 = vmatprep.subr.bf16.mxu0 %v831
  %1088 = vmatpush2.bf16.msra.mxu0 %v830
  %1089 = vmatprep.subr.bf16.mxu0 %v828
  %1090 = vmatpush2.bf16.msra.mxu0 %v827
  %1091 = vmatprep.subr.bf16.mxu0 %v825
  %1092 = vmatpush2.bf16.msra.mxu0 %v824
  %1093 = vmatprep.subr.bf16.mxu0 %v822
  %1094 = vmatpush2.bf16.msra.mxu0 %v821
  %1095 = vmatprep.subr.bf16.mxu0 %v819
  %1096 = vmatpush2.bf16.msra.mxu0 %v818
  %1097 = vmatprep.subr.bf16.mxu0 %v816
  %1098 = vmatpush2.bf16.msra.mxu0 %v815
  %1099 = vmatprep.subr.bf16.mxu0 %v813
  %1100 = vmatpush2.bf16.msra.mxu0 %v812
  %1101 = vmatprep.mubr.bf16.mxu0 %v251
  %1102 = vmatmul.mubr.bf16.gmra.mxu0 %v250
  %v1103 = vpop.f32.mrf.mxu0
  %v1104 = vadd.f32 %v1063, %v1103
  %v1105 = vpop.f32.mrf.mxu0
  %v1106 = vadd.f32 %v1065, %v1105
  %v1107 = vpop.f32.mrf.mxu0
  %v1108 = vpop.f32.mrf.mxu0
  %1109 = vdwg.mxu0
  %1110 = vmatprep.subr.bf16.mxu0 %v858
  %1111 = vmatpush1.bf16.msra.mxu0 %v857
  %1112 = vmatprep.subr.bf16.mxu0 %v855
  %1113 = vmatpush1.bf16.msra.mxu0 %v854
  %1114 = vmatprep.subr.bf16.mxu0 %v852
  %1115 = vmatpush1.bf16.msra.mxu0 %v851
  %1116 = vmatprep.subr.bf16.mxu0 %v849
  %1117 = vmatpush1.bf16.msra.mxu0 %v848
  %1118 = vmatprep.subr.bf16.mxu0 %v846
  %1119 = vmatpush1.bf16.msra.mxu0 %v845
  %1120 = vmatprep.subr.bf16.mxu0 %v843
  %1121 = vmatpush1.bf16.msra.mxu0 %v842
  %1122 = vmatprep.subr.bf16.mxu0 %v840
  %1123 = vmatpush1.bf16.msra.mxu0 %v839
  %1124 = vmatprep.subr.bf16.mxu0 %v837
  %1125 = vmatpush1.bf16.msra.mxu0 %v836
  %1126 = vmatprep.subr.bf16.mxu0 %v882
  %1127 = vmatpush2.bf16.msra.mxu0 %v881
  %1128 = vmatprep.subr.bf16.mxu0 %v879
  %1129 = vmatpush2.bf16.msra.mxu0 %v878
  %1130 = vmatprep.subr.bf16.mxu0 %v876
  %1131 = vmatpush2.bf16.msra.mxu0 %v875
  %1132 = vmatprep.subr.bf16.mxu0 %v873
  %1133 = vmatpush2.bf16.msra.mxu0 %v872
  %1134 = vmatprep.subr.bf16.mxu0 %v870
  %1135 = vmatpush2.bf16.msra.mxu0 %v869
  %1136 = vmatprep.subr.bf16.mxu0 %v867
  %1137 = vmatpush2.bf16.msra.mxu0 %v866
  %1138 = vmatprep.subr.bf16.mxu0 %v864
  %1139 = vmatpush2.bf16.msra.mxu0 %v863
  %1140 = vmatprep.subr.bf16.mxu0 %v861
  %1141 = vmatpush2.bf16.msra.mxu0 %v860
  %1142 = vmatprep.mubr.bf16.mxu0 %v253
  %1143 = vmatmul.mubr.bf16.gmra.mxu0 %v252
  %v1144 = vpop.f32.mrf.mxu0
  %v1145 = vadd.f32 %v1104, %v1144
  %v1146 = vpop.f32.mrf.mxu0
  %v1147 = vadd.f32 %v1106, %v1146
  %v1148 = vpop.f32.mrf.mxu0
  %v1149 = vpop.f32.mrf.mxu0
  %1150 = vdwg.mxu0
  %1151 = vmatprep.subr.bf16.mxu0 0
  %1152 = vmatpush1.bf16.msra.mxu0 %v763
  %1153 = vmatprep.subr.bf16.mxu0 0
  %1154 = vmatpush1.bf16.msra.mxu0 %v760
  %1155 = vmatprep.subr.bf16.mxu0 0
  %1156 = vmatpush1.bf16.msra.mxu0 %v757
  %1157 = vmatprep.subr.bf16.mxu0 0
  %1158 = vmatpush1.bf16.msra.mxu0 %v754
  %1159 = vmatprep.subr.bf16.mxu0 0
  %1160 = vmatpush1.bf16.msra.mxu0 %v751
  %1161 = vmatprep.subr.bf16.mxu0 0
  %1162 = vmatpush1.bf16.msra.mxu0 %v748
  %1163 = vmatprep.subr.bf16.mxu0 0
  %1164 = vmatpush1.bf16.msra.mxu0 %v745
  %1165 = vmatprep.subr.bf16.mxu0 0
  %1166 = vmatpush1.bf16.msra.mxu0 %v742
  %1167 = vmatprep.subr.bf16.mxu0 0
  %1168 = vmatpush2.bf16.msra.mxu0 %v787
  %1169 = vmatprep.subr.bf16.mxu0 0
  %1170 = vmatpush2.bf16.msra.mxu0 %v784
  %1171 = vmatprep.subr.bf16.mxu0 0
  %1172 = vmatpush2.bf16.msra.mxu0 %v781
  %1173 = vmatprep.subr.bf16.mxu0 0
  %1174 = vmatpush2.bf16.msra.mxu0 %v778
  %1175 = vmatprep.subr.bf16.mxu0 0
  %1176 = vmatpush2.bf16.msra.mxu0 %v775
  %1177 = vmatprep.subr.bf16.mxu0 0
  %1178 = vmatpush2.bf16.msra.mxu0 %v772
  %1179 = vmatprep.subr.bf16.mxu0 0
  %1180 = vmatpush2.bf16.msra.mxu0 %v769
  %1181 = vmatprep.subr.bf16.mxu0 0
  %1182 = vmatpush2.bf16.msra.mxu0 %v766
  %1183 = vmatprep.mubr.bf16.mxu0 %v249
  %1184 = vmatmul.mubr.bf16.gmra.mxu0 %v248
  %v1185 = vpop.f32.mrf.mxu0
  %v1186 = vadd.f32 %v235, %v1185
  %v1187 = vpop.f32.mrf.mxu0
  %v1188 = vpop.f32.mrf.mxu0
  %v1189 = vpop.f32.mrf.mxu0
  %1190 = vdwg.mxu0
  %1191 = vmatprep.subr.bf16.mxu0 0
  %1192 = vmatpush1.bf16.msra.mxu0 %v811
  %1193 = vmatprep.subr.bf16.mxu0 0
  %1194 = vmatpush1.bf16.msra.mxu0 %v808
  %1195 = vmatprep.subr.bf16.mxu0 0
  %1196 = vmatpush1.bf16.msra.mxu0 %v805
  %1197 = vmatprep.subr.bf16.mxu0 0
  %1198 = vmatpush1.bf16.msra.mxu0 %v802
  %1199 = vmatprep.subr.bf16.mxu0 0
  %1200 = vmatpush1.bf16.msra.mxu0 %v799
  %1201 = vmatprep.subr.bf16.mxu0 0
  %1202 = vmatpush1.bf16.msra.mxu0 %v796
  %1203 = vmatprep.subr.bf16.mxu0 0
  %1204 = vmatpush1.bf16.msra.mxu0 %v793
  %1205 = vmatprep.subr.bf16.mxu0 0
  %1206 = vmatpush1.bf16.msra.mxu0 %v790
  %1207 = vmatprep.subr.bf16.mxu0 0
  %1208 = vmatpush2.bf16.msra.mxu0 %v835
  %1209 = vmatprep.subr.bf16.mxu0 0
  %1210 = vmatpush2.bf16.msra.mxu0 %v832
  %1211 = vmatprep.subr.bf16.mxu0 0
  %1212 = vmatpush2.bf16.msra.mxu0 %v829
  %1213 = vmatprep.subr.bf16.mxu0 0
  %1214 = vmatpush2.bf16.msra.mxu0 %v826
  %1215 = vmatprep.subr.bf16.mxu0 0
  %1216 = vmatpush2.bf16.msra.mxu0 %v823
  %1217 = vmatprep.subr.bf16.mxu0 0
  %1218 = vmatpush2.bf16.msra.mxu0 %v820
  %1219 = vmatprep.subr.bf16.mxu0 0
  %1220 = vmatpush2.bf16.msra.mxu0 %v817
  %1221 = vmatprep.subr.bf16.mxu0 0
  %1222 = vmatpush2.bf16.msra.mxu0 %v814
  %1223 = vmatprep.mubr.bf16.mxu0 %v251
  %1224 = vmatmul.mubr.bf16.gmra.mxu0 %v250
  %v1225 = vpop.f32.mrf.mxu0
  %v1226 = vadd.f32 %v1186, %v1225
  %v1227 = vpop.f32.mrf.mxu0
  %v1228 = vpop.f32.mrf.mxu0
  %v1229 = vpop.f32.mrf.mxu0
  %1230 = vdwg.mxu0
  %1231 = vmatprep.subr.bf16.mxu0 0
  %1232 = vmatpush1.bf16.msra.mxu0 %v859
  %1233 = vmatprep.subr.bf16.mxu0 0
  %1234 = vmatpush1.bf16.msra.mxu0 %v856
  %1235 = vmatprep.subr.bf16.mxu0 0
  %1236 = vmatpush1.bf16.msra.mxu0 %v853
  %1237 = vmatprep.subr.bf16.mxu0 0
  %1238 = vmatpush1.bf16.msra.mxu0 %v850
  %1239 = vmatprep.subr.bf16.mxu0 0
  %1240 = vmatpush1.bf16.msra.mxu0 %v847
  %1241 = vmatprep.subr.bf16.mxu0 0
  %1242 = vmatpush1.bf16.msra.mxu0 %v844
  %1243 = vmatprep.subr.bf16.mxu0 0
  %1244 = vmatpush1.bf16.msra.mxu0 %v841
  %1245 = vmatprep.subr.bf16.mxu0 0
  %1246 = vmatpush1.bf16.msra.mxu0 %v838
  %1247 = vmatprep.subr.bf16.mxu0 0
  %1248 = vmatpush2.bf16.msra.mxu0 %v883
  %1249 = vmatprep.subr.bf16.mxu0 0
  %1250 = vmatpush2.bf16.msra.mxu0 %v880
  %1251 = vmatprep.subr.bf16.mxu0 0
  %1252 = vmatpush2.bf16.msra.mxu0 %v877
  %1253 = vmatprep.subr.bf16.mxu0 0
  %1254 = vmatpush2.bf16.msra.mxu0 %v874
  %1255 = vmatprep.subr.bf16.mxu0 0
  %1256 = vmatpush2.bf16.msra.mxu0 %v871
  %1257 = vmatprep.subr.bf16.mxu0 0
  %1258 = vmatpush2.bf16.msra.mxu0 %v868
  %1259 = vmatprep.subr.bf16.mxu0 0
  %1260 = vmatpush2.bf16.msra.mxu0 %v865
  %1261 = vmatprep.subr.bf16.mxu0 0
  %1262 = vmatpush2.bf16.msra.mxu0 %v862
  %1263 = vmatprep.mubr.bf16.mxu0 %v253
  %1264 = vmatmul.mubr.bf16.gmra.mxu0 %v252
  %v1265 = vpop.f32.mrf.mxu0
  %v1266 = vadd.f32 %v1226, %v1265
  %v1267 = vpop.f32.mrf.mxu0
  %v1268 = vpop.f32.mrf.mxu0
  %v1269 = vpop.f32.mrf.mxu0
  %1270 = vdwg.mxu0
  %v1271 = vlaneseq
  %v1272 = vand.u32 %v1271, 127
  %v1273 = vadd.s32 %v1272, 128
  %v1274 = vadd.s32 %v1272, 256
  %vm1275 = vcmp.lt.s32.totalorder %v1272, 300
  %vm1276 = vcmp.lt.s32.totalorder %v1273, 300
  %vm1277 = vcmp.lt.s32.totalorder %v1274, 300
  %v1278 = vsel %vm1275, 1, 0
  %v1279 = vsel %vm1276, 1, 0
  %v1280 = vsel %vm1277, 1, 0
  %v1281 = vcvt.s32.f32 %v1278
  %v1282 = vcvt.s32.f32 %v1279
  %v1283 = vcvt.s32.f32 %v1280
  %v1284 = vmul.f32 %v1145, %v1281
  %v1285 = vmul.f32 %v1147, %v1282
  %v1286 = vmul.f32 %v1266, %v1283
  %v1287 = vadd.f32 %v1284, %v1285
  %v1288 = vadd.f32 %v1287, %v1286
  %1289 = vadd.xlane.f32.xlu0 %v1288
  %v1290 = vpop.xlane.xlu0 %1289
  %v1291 = vmul.f32 %v1290, 0.0033333334
  %v1292 = vsub.f32 %v1145, %v1291
  %v1293 = vsub.f32 %v1147, %v1291
  %v1294 = vsub.f32 %v1266, %v1291
  %v1295 = vmul.f32 %v1292, %v1281
  %v1296 = vmul.f32 %v1293, %v1282
  %v1297 = vmul.f32 %v1294, %v1283
  %v1298 = vmul.f32 %v1295, %v1295
  %v1299 = vmul.f32 %v1296, %v1296
  %v1300 = vmul.f32 %v1297, %v1297
  %v1301 = vadd.f32 %v1298, %v1299
  %v1302 = vadd.f32 %v1301, %v1300
  %1303 = vadd.xlane.f32.xlu0 %v1302
  %v1304 = vpop.xlane.xlu0 %1303
  %v1305 = vmul.f32 %v1304, 0.0033333334
  %v1306 = vadd.f32 %v1305, 1e-05
  %v1307 = vrsqrt.pop %v1306
  %v1308 = vmul.f32 %v1292, %v1307
  %v1309 = vmul.f32 %v1293, %v1307
  %v1310 = vmul.f32 %v1294, %v1307
  %v1311 = vmax.f32 %v1308, 0.0
  %v1312 = vmax.f32 %v1309, 0.0
  %v1313 = vmax.f32 %v1310, 0.0
  %v1314 = vpack.c.bf16 %v1311, %v1311
  %v1315 = vpack.c.bf16 %v1312, %v1312
  %v1316 = vpack.c.bf16 %v1313, %v1313
  %v1317 = vld [vmem:[%s3] sm:$0xf]
  %v1318 = vld [vmem:[%s3 + $0x4] sm:$0xf]
  %v1319 = vld [vmem:[%s3 + $0x8] sm:$0xf]
  %v1320 = vld [vmem:[%s3 + $0xc] sm:$0xf]
  %v1321 = vld [vmem:[%s3 + $0x10] sm:$0xf]
  %v1322 = vld [vmem:[%s3 + $0x14] sm:$0xf]
  %v1323 = vld [vmem:[%s3 + $0x18] sm:$0xf]
  %v1324 = vld [vmem:[%s3 + $0x1c] sm:$0xf]
  %v1325 = vld [vmem:[%s3 + $0x20] sm:$0xf]
  %v1326 = vld [vmem:[%s3 + $0x24] sm:$0xf]
  %v1327 = vld [vmem:[%s3 + $0x28] sm:$0xf]
  %v1328 = vld [vmem:[%s3 + $0x2c] sm:$0xf]
  %v1329 = vld [vmem:[%s3 + $0x30] sm:$0xf]
  %v1330 = vld [vmem:[%s3 + $0x34] sm:$0xf]
  %v1331 = vld [vmem:[%s3 + $0x38] sm:$0xf]
  %v1332 = vld [vmem:[%s3 + $0x3c] sm:$0xf]
  %v1333 = vld [vmem:[%s3 + $0x40] sm:$0xf]
  %v1334 = vld [vmem:[%s3 + $0x44] sm:$0xf]
  %v1335 = vld [vmem:[%s3 + $0x48] sm:$0xf]
  %v1336 = vld [vmem:[%s3 + $0x4c] sm:$0xf]
  %v1337 = vld [vmem:[%s3 + $0x50] sm:$0xf]
  %v1338 = vld [vmem:[%s3 + $0x54] sm:$0xf]
  %v1339 = vld [vmem:[%s3 + $0x58] sm:$0xf]
  %v1340 = vld [vmem:[%s3 + $0x5c] sm:$0xf]
  %v1341 = vld [vmem:[%s3 + $0x60] sm:$0xf]
  %v1342 = vld [vmem:[%s3 + $0x64] sm:$0xf]
  %v1343 = vld [vmem:[%s3 + $0x68] sm:$0xf]
  %v1344 = vld [vmem:[%s3 + $0x6c] sm:$0xf]
  %v1345 = vld [vmem:[%s3 + $0x70] sm:$0xf]
  %v1346 = vld [vmem:[%s3 + $0x74] sm:$0xf]
  %v1347 = vld [vmem:[%s3 + $0x78] sm:$0xf]
  %v1348 = vld [vmem:[%s3 + $0x7c] sm:$0xf]
  %v1349 = vld [vmem:[%s3 + $0x80] sm:$0xf]
  %v1350 = vld [vmem:[%s3 + $0x84] sm:$0xf]
  %v1351 = vld [vmem:[%s3 + $0x88] sm:$0xf]
  %v1352 = vld [vmem:[%s3 + $0x8c] sm:$0xf]
  %v1353 = vld [vmem:[%s3 + $0x90] sm:$0xf]
  %v1354 = vld [vmem:[%s3 + $0x94] sm:$0xf]
  %v1355 = vld [vmem:[%s3 + $0x98] sm:$0xf]
  %v1356 = vld [vmem:[%s3 + $0x9c] sm:$0xf]
  %v1357 = vld [vmem:[%s3 + $0xa0] sm:$0xf]
  %v1358 = vld [vmem:[%s3 + $0xa4] sm:$0xf]
  %v1359 = vld [vmem:[%s3 + $0xa8] sm:$0xf]
  %v1360 = vld [vmem:[%s3 + $0xac] sm:$0xf]
  %v1361 = vld [vmem:[%s3 + $0xb0] sm:$0xf]
  %v1362 = vld [vmem:[%s3 + $0xb4] sm:$0xf]
  %v1363 = vld [vmem:[%s3 + $0xb8] sm:$0xf]
  %v1364 = vld [vmem:[%s3 + $0xbc] sm:$0xf]
  %v1365 = vld [vmem:[%s4] sm:$0x1]
  %v1367 = vlaneseq
  %v1368 = vshrl.u32 %v1367, 7
  %v1369 = vsub.s32 0, %v1368
  %v1370 = vrot.slane %v1365, %v1369
  %v1420 = vunpack.c.l.b16 %v1317
  %v1421 = vunpack.c.l.b16 %v1318
  %v1422 = vunpack.c.l.b16 %v1319
  %v1423 = vunpack.c.l.b16 %v1320
  %v1424 = vunpack.c.l.b16 %v1321
  %v1425 = vunpack.c.l.b16 %v1322
  %v1426 = vunpack.c.l.b16 %v1323
  %v1427 = vunpack.c.l.b16 %v1324
  %v1428 = vunpack.c.l.b16 %v1325
  %v1429 = vunpack.c.l.b16 %v1326
  %v1430 = vunpack.c.l.b16 %v1327
  %v1431 = vunpack.c.l.b16 %v1328
  %v1432 = vunpack.c.l.b16 %v1329
  %v1433 = vunpack.c.l.b16 %v1330
  %v1434 = vunpack.c.l.b16 %v1331
  %v1435 = vunpack.c.l.b16 %v1332
  %v1436 = vunpack.c.l.b16 %v1333
  %v1437 = vunpack.c.l.b16 %v1334
  %v1438 = vunpack.c.l.b16 %v1335
  %v1439 = vunpack.c.l.b16 %v1336
  %v1440 = vunpack.c.l.b16 %v1337
  %v1441 = vunpack.c.l.b16 %v1338
  %v1442 = vunpack.c.l.b16 %v1339
  %v1443 = vunpack.c.l.b16 %v1340
  %v1444 = vunpack.c.l.b16 %v1341
  %v1445 = vunpack.c.l.b16 %v1342
  %v1446 = vunpack.c.l.b16 %v1343
  %v1447 = vunpack.c.l.b16 %v1344
  %v1448 = vunpack.c.l.b16 %v1345
  %v1449 = vunpack.c.l.b16 %v1346
  %v1450 = vunpack.c.l.b16 %v1347
  %v1451 = vunpack.c.l.b16 %v1348
  %v1452 = vunpack.c.l.b16 %v1349
  %v1453 = vunpack.c.l.b16 %v1350
  %v1454 = vunpack.c.l.b16 %v1351
  %v1455 = vunpack.c.l.b16 %v1352
  %v1456 = vunpack.c.l.b16 %v1353
  %v1457 = vunpack.c.l.b16 %v1354
  %v1458 = vunpack.c.l.b16 %v1355
  %v1459 = vunpack.c.l.b16 %v1356
  %v1460 = vunpack.c.l.b16 %v1357
  %v1461 = vunpack.c.l.b16 %v1358
  %v1462 = vunpack.c.l.b16 %v1359
  %v1463 = vunpack.c.l.b16 %v1360
  %v1464 = vunpack.c.l.b16 %v1361
  %v1465 = vunpack.c.l.b16 %v1362
  %v1466 = vunpack.c.l.b16 %v1363
  %v1467 = vunpack.c.l.b16 %v1364
  %v1468 = vpack.c.b16 %v1421, %v1420
  %v1469 = vpack.c.b16 %v1423, %v1422
  %v1470 = vpack.c.b16 %v1425, %v1424
  %v1471 = vpack.c.b16 %v1427, %v1426
  %v1472 = vpack.c.b16 %v1429, %v1428
  %v1473 = vpack.c.b16 %v1431, %v1430
  %v1474 = vpack.c.b16 %v1433, %v1432
  %v1475 = vpack.c.b16 %v1435, %v1434
  %v1476 = vpack.c.b16 %v1437, %v1436
  %v1477 = vpack.c.b16 %v1439, %v1438
  %v1478 = vpack.c.b16 %v1441, %v1440
  %v1479 = vpack.c.b16 %v1443, %v1442
  %v1480 = vpack.c.b16 %v1445, %v1444
  %v1481 = vpack.c.b16 %v1447, %v1446
  %v1482 = vpack.c.b16 %v1449, %v1448
  %v1483 = vpack.c.b16 %v1451, %v1450
  %v1484 = vpack.c.b16 %v1453, %v1452
  %v1485 = vpack.c.b16 %v1455, %v1454
  %v1486 = vpack.c.b16 %v1457, %v1456
  %v1487 = vpack.c.b16 %v1459, %v1458
  %v1488 = vpack.c.b16 %v1461, %v1460
  %v1489 = vpack.c.b16 %v1463, %v1462
  %v1490 = vpack.c.b16 %v1465, %v1464
  %v1491 = vpack.c.b16 %v1467, %v1466
  %1516 = vmatprep.subr.bf16.mxu0 0
  %1517 = vmatpush1.bf16.msra.mxu0 %v1475
  %1518 = vmatprep.subr.bf16.mxu0 0
  %1519 = vmatpush1.bf16.msra.mxu0 %v1474
  %1520 = vmatprep.subr.bf16.mxu0 0
  %1521 = vmatpush1.bf16.msra.mxu0 %v1473
  %1522 = vmatprep.subr.bf16.mxu0 0
  %1523 = vmatpush1.bf16.msra.mxu0 %v1472
  %1524 = vmatprep.subr.bf16.mxu0 0
  %1525 = vmatpush1.bf16.msra.mxu0 %v1471
  %1526 = vmatprep.subr.bf16.mxu0 0
  %1527 = vmatpush1.bf16.msra.mxu0 %v1470
  %1528 = vmatprep.subr.bf16.mxu0 0
  %1529 = vmatpush1.bf16.msra.mxu0 %v1469
  %1530 = vmatprep.subr.bf16.mxu0 0
  %1531 = vmatpush1.bf16.msra.mxu0 %v1468
  %1532 = vmatprep.subr.bf16.mxu0 0
  %1533 = vmatpush2.bf16.msra.mxu0 %v1483
  %1534 = vmatprep.subr.bf16.mxu0 0
  %1535 = vmatpush2.bf16.msra.mxu0 %v1482
  %1536 = vmatprep.subr.bf16.mxu0 0
  %1537 = vmatpush2.bf16.msra.mxu0 %v1481
  %1538 = vmatprep.subr.bf16.mxu0 0
  %1539 = vmatpush2.bf16.msra.mxu0 %v1480
  %1540 = vmatprep.subr.bf16.mxu0 0
  %1541 = vmatpush2.bf16.msra.mxu0 %v1479
  %1542 = vmatprep.subr.bf16.mxu0 0
  %1543 = vmatpush2.bf16.msra.mxu0 %v1478
  %1544 = vmatprep.subr.bf16.mxu0 0
  %1545 = vmatpush2.bf16.msra.mxu0 %v1477
  %1546 = vmatprep.subr.bf16.mxu0 0
  %1547 = vmatpush2.bf16.msra.mxu0 %v1476
  %1548 = vmatprep.mubr.bf16.mxu0 %v1315
  %1549 = vmatmul.mubr.bf16.gmra.mxu0 %v1314
  %v1550 = vpop.f32.mrf.mxu0
  %v1551 = vadd.f32 %v1370, %v1550
  %v1552 = vpop.f32.mrf.mxu0
  %v1553 = vpop.f32.mrf.mxu0
  %v1554 = vpop.f32.mrf.mxu0
  %1555 = vdwg.mxu0
  %1556 = vmatprep.subr.bf16.mxu0 0
  %1557 = vmatpush1.bf16.msra.mxu0 %v1491
  %1558 = vmatprep.subr.bf16.mxu0 0
  %1559 = vmatpush1.bf16.msra.mxu0 %v1490
  %1560 = vmatprep.subr.bf16.mxu0 0
  %1561 = vmatpush1.bf16.msra.mxu0 %v1489
  %1562 = vmatprep.subr.bf16.mxu0 0
  %1563 = vmatpush1.bf16.msra.mxu0 %v1488
  %1564 = vmatprep.subr.bf16.mxu0 0
  %1565 = vmatpush1.bf16.msra.mxu0 %v1487
  %1566 = vmatprep.subr.bf16.mxu0 0
  %1567 = vmatpush1.bf16.msra.mxu0 %v1486
  %1568 = vmatprep.subr.bf16.mxu0 0
  %1569 = vmatpush1.bf16.msra.mxu0 %v1485
  %1570 = vmatprep.subr.bf16.mxu0 0
  %1571 = vmatpush1.bf16.msra.mxu0 %v1484
  %1572 = vmatprep.subr.bf16.mxu0 0
  %1573 = vmatpush2.bf16.msra.mxu0 0
  %1574 = vmatprep.subr.bf16.mxu0 0
  %1575 = vmatpush2.bf16.msra.mxu0 0
  %1576 = vmatprep.subr.bf16.mxu0 0
  %1577 = vmatpush2.bf16.msra.mxu0 0
  %1578 = vmatprep.subr.bf16.mxu0 0
  %1579 = vmatpush2.bf16.msra.mxu0 0
  %1580 = vmatprep.subr.bf16.mxu0 0
  %1581 = vmatpush2.bf16.msra.mxu0 0
  %1582 = vmatprep.subr.bf16.mxu0 0
  %1583 = vmatpush2.bf16.msra.mxu0 0
  %1584 = vmatprep.subr.bf16.mxu0 0
  %1585 = vmatpush2.bf16.msra.mxu0 0
  %1586 = vmatprep.subr.bf16.mxu0 0
  %1587 = vmatpush2.bf16.msra.mxu0 0
  %1588 = vmatprep.mubr.bf16.mxu0 0
  %1589 = vmatmul.mubr.bf16.gmra.mxu0 %v1316
  %v1590 = vpop.f32.mrf.mxu0
  %v1591 = vadd.f32 %v1551, %v1590
  %v1592 = vpop.f32.mrf.mxu0
  %v1593 = vpop.f32.mrf.mxu0
  %v1594 = vpop.f32.mrf.mxu0
  %1595 = vdwg.mxu0
  %vm1596 = vcmp.lt.s32.totalorder %v1272, 50
  %v1597 = vsel %vm1596, 1, 0
  %v1598 = vcvt.s32.f32 %v1597
  %v1599 = vmul.f32 %v1591, %v1598
  %1600 = vadd.xlane.f32.xlu0 %v1599
  %v1601 = vpop.xlane.xlu0 %1600
  %v1602 = vmul.f32 %v1601, 0.02
  %v1603 = vsub.f32 %v1591, %v1602
  %v1604 = vmul.f32 %v1603, %v1598
  %v1605 = vmul.f32 %v1604, %v1604
  %1606 = vadd.xlane.f32.xlu0 %v1605
  %v1607 = vpop.xlane.xlu0 %1606
  %v1608 = vmul.f32 %v1607, 0.02
  %v1609 = vadd.f32 %v1608, 1e-05
  %v1610 = vrsqrt.pop %v1609
  %v1611 = vmul.f32 %v1603, %v1610
  %v1612 = vmax.f32 %v1611, 0.0
  %v1613 = vpack.c.bf16 %v1612, %v1612
  %v1614 = vld [vmem:[%s5] sm:$0xf]
  %v1615 = vld [vmem:[%s5 + $0x4] sm:$0xf]
  %v1616 = vld [vmem:[%s5 + $0x8] sm:$0xf]
  %v1617 = vld [vmem:[%s5 + $0xc] sm:$0xf]
  %v1618 = vld [vmem:[%s5 + $0x10] sm:$0xf]
  %v1619 = vld [vmem:[%s5 + $0x14] sm:$0xf]
  %v1620 = vld [vmem:[%s5 + $0x18] sm:$0xf]
  %v1621 = vld [vmem:[%s5 + $0x1c] sm:$0xf]
  %v1622 = vld [vmem:[%s5 + $0x20] sm:$0xf]
  %v1623 = vld [vmem:[%s5 + $0x24] sm:$0xf]
  %v1624 = vld [vmem:[%s5 + $0x28] sm:$0xf]
  %v1625 = vld [vmem:[%s5 + $0x2c] sm:$0xf]
  %v1626 = vld [vmem:[%s5 + $0x30] sm:$0xf]
  %v1627 = vld [vmem:[%s5 + $0x34] sm:$0xf]
  %v1628 = vld [vmem:[%s5 + $0x38] sm:$0xf]
  %v1629 = vld [vmem:[%s5 + $0x3c] sm:$0xf]
  %v1630 = vld [vmem:[%s6] sm:$0x1]
  %v1632 = vlaneseq
  %v1633 = vshrl.u32 %v1632, 7
  %v1634 = vsub.s32 0, %v1633
  %v1635 = vrot.slane %v1630, %v1634
  %v1653 = vunpack.c.l.b16 %v1614
  %v1654 = vunpack.c.l.b16 %v1615
  %v1655 = vunpack.c.l.b16 %v1616
  %v1656 = vunpack.c.l.b16 %v1617
  %v1657 = vunpack.c.l.b16 %v1618
  %v1658 = vunpack.c.l.b16 %v1619
  %v1659 = vunpack.c.l.b16 %v1620
  %v1660 = vunpack.c.l.b16 %v1621
  %v1661 = vunpack.c.l.b16 %v1622
  %v1662 = vunpack.c.l.b16 %v1623
  %v1663 = vunpack.c.l.b16 %v1624
  %v1664 = vunpack.c.l.b16 %v1625
  %v1665 = vunpack.c.l.b16 %v1626
  %v1666 = vunpack.c.l.b16 %v1627
  %v1667 = vunpack.c.l.b16 %v1628
  %v1668 = vunpack.c.l.b16 %v1629
  %v1669 = vpack.c.b16 %v1654, %v1653
  %v1670 = vpack.c.b16 %v1656, %v1655
  %v1671 = vpack.c.b16 %v1658, %v1657
  %v1672 = vpack.c.b16 %v1660, %v1659
  %v1673 = vpack.c.b16 %v1662, %v1661
  %v1674 = vpack.c.b16 %v1664, %v1663
  %v1675 = vpack.c.b16 %v1666, %v1665
  %v1676 = vpack.c.b16 %v1668, %v1667
  %1685 = vmatprep.subr.bf16.mxu0 0
  %1686 = vmatpush1.bf16.msra.mxu0 %v1676
  %1687 = vmatprep.subr.bf16.mxu0 0
  %1688 = vmatpush1.bf16.msra.mxu0 %v1675
  %1689 = vmatprep.subr.bf16.mxu0 0
  %1690 = vmatpush1.bf16.msra.mxu0 %v1674
  %1691 = vmatprep.subr.bf16.mxu0 0
  %1692 = vmatpush1.bf16.msra.mxu0 %v1673
  %1693 = vmatprep.subr.bf16.mxu0 0
  %1694 = vmatpush1.bf16.msra.mxu0 %v1672
  %1695 = vmatprep.subr.bf16.mxu0 0
  %1696 = vmatpush1.bf16.msra.mxu0 %v1671
  %1697 = vmatprep.subr.bf16.mxu0 0
  %1698 = vmatpush1.bf16.msra.mxu0 %v1670
  %1699 = vmatprep.subr.bf16.mxu0 0
  %1700 = vmatpush1.bf16.msra.mxu0 %v1669
  %1701 = vmatprep.subr.bf16.mxu0 0
  %1702 = vmatpush2.bf16.msra.mxu0 0
  %1703 = vmatprep.subr.bf16.mxu0 0
  %1704 = vmatpush2.bf16.msra.mxu0 0
  %1705 = vmatprep.subr.bf16.mxu0 0
  %1706 = vmatpush2.bf16.msra.mxu0 0
  %1707 = vmatprep.subr.bf16.mxu0 0
  %1708 = vmatpush2.bf16.msra.mxu0 0
  %1709 = vmatprep.subr.bf16.mxu0 0
  %1710 = vmatpush2.bf16.msra.mxu0 0
  %1711 = vmatprep.subr.bf16.mxu0 0
  %1712 = vmatpush2.bf16.msra.mxu0 0
  %1713 = vmatprep.subr.bf16.mxu0 0
  %1714 = vmatpush2.bf16.msra.mxu0 0
  %1715 = vmatprep.subr.bf16.mxu0 0
  %1716 = vmatpush2.bf16.msra.mxu0 0
  %1717 = vmatprep.mubr.bf16.mxu0 0
  %1718 = vmatmul.mubr.bf16.gmra.mxu0 %v1613
  %v1719 = vpop.f32.mrf.mxu0
  %v1720 = vadd.f32 %v1635, %v1719
  %v1721 = vpop.f32.mrf.mxu0
  %v1722 = vpop.f32.mrf.mxu0
  %v1723 = vpop.f32.mrf.mxu0
  %1724 = vdwg.mxu0
  %v1725 = vmax.f32 %v1720, 0.0
  %1726 = vst [vmem:[%s7] sm:$0xff] %v1725
  // Predicated region
  $region30: #{forward.1} parent=0 // pred_check
    _
  $region31: #{forward.1} parent=0 // pred_check_branch
    %1728 = sbr.rel (0) target = $region33
  $region32: #{forward.1} parent=0 // pred_region
    _
  $region33: #{forward.1} parent=0 // pred_fallthru
    _
  // Predicated region
  $region34: #{forward.1} parent=0 // pred_check
    _
  $region35: #{forward.1} parent=0 // pred_check_branch
    %1730 = sbr.rel (0) target = $region37
  $region36: #{forward.1} parent=0 // pred_region
    _
  $region37: #{forward.1} parent=0 // pred_fallthru
    _

</llo_original>
